<compile_context>
chip_gen: v7x
topology: tpu7x:2x2x1
jax: 0.10.0
libtpu: 0.0.40
codegen_flags: <defaults>
</compile_context>

<pallas_src>
import functools

import jax
import jax.numpy as jnp
from jax.experimental import pallas as pl
from jax.experimental.pallas import tpu as pltpu


def _attention_kernel(x_ref, wq_ref, wk_ref, wv_ref, wp_ref, b_ref,
                      o_ref, k_scr, v_scr, *, num_heads, tq):
    """One grid step = (batch b, query tile qi); all heads handled in-kernel.

    x_ref  : (N, C)   full sequence for batch b (resident across query tiles)
    wq_ref : (C, C)   Q weights (softmax scale pre-folded), col index = h*hd+d
    wk_ref : (C, C)   K weights
    wv_ref : (C, C)   V weights
    wp_ref : (C, C)   output projection weights
    b_ref  : (1, C)   output projection bias
    o_ref  : (tq, C)  output tile
    k_scr  : (N, C)   K (all heads), computed once per batch at qi == 0
    v_scr  : (N, C)   V (all heads), computed once per batch at qi == 0
    """
    N, C = x_ref.shape
    hd = C // num_heads
    dt = x_ref.dtype                    # MXU operand dtype (bf16 callers -> native path)
    qi = pl.program_id(1)

    # K/V projections for the whole sequence, all heads at once (full-C-wide
    # MXU matmuls), hoisted so every query tile of this batch reuses them.
    @pl.when(qi == 0)
    def _():
        xin = x_ref[...]
        k_scr[...] = jnp.dot(xin, wk_ref[...],
                             preferred_element_type=jnp.float32).astype(k_scr.dtype)
        v_scr[...] = jnp.dot(xin, wv_ref[...],
                             preferred_element_type=jnp.float32).astype(v_scr.dtype)

    # Query rows for this tile come straight from the already-resident x block.
    xq = x_ref[pl.ds(pl.multiple_of(qi * tq, tq), tq), :]              # (tq, C)
    q = jnp.dot(xq, wq_ref[...],
                preferred_element_type=jnp.float32).astype(dt)          # (tq, C)
    k = k_scr[...]                                                       # (N, C)
    v = v_scr[...]                                                       # (N, C)

    # Per-head attention (H is small -> static unroll). Softmax stays in f32;
    # the normalization is applied after p @ v on (tq, hd), not (tq, N).
    o_cols = []
    for h in range(num_heads):
        sl = slice(h * hd, (h + 1) * hd)
        q_h = q[:, sl]                                                   # (tq, hd)
        k_h = k[:, sl]                                                   # (N, hd)
        v_h = v[:, sl]                                                   # (N, hd)
        # q_h @ k_h^T without materializing a transposed K tile.
        s = jax.lax.dot_general(q_h, k_h, (((1,), (1,)), ((), ())),
                                preferred_element_type=jnp.float32)      # (tq, N)
        s = s - jnp.max(s, axis=-1, keepdims=True)
        p = jnp.exp(s)
        denom = jnp.sum(p, axis=-1, keepdims=True)                       # (tq, 1)
        o_h = jnp.dot(p.astype(dt), v_h,
                      preferred_element_type=jnp.float32)                # (tq, hd)
        o_h = o_h * pl.reciprocal(denom, approx=False)                   # exact recip
        o_cols.append(o_h)
    o = jnp.concatenate(o_cols, axis=-1).astype(dt)                      # (tq, C)

    # Final projection: one full-width (tq, C) @ (C, C) matmul + bias.
    out = jnp.dot(o, wp_ref[...], preferred_element_type=jnp.float32)
    o_ref[...] = (out + b_ref[...]).astype(o_ref.dtype)


def _query_tile(n):
    """Query-tile size: one tile when the (tq, N) logits are modest, otherwise
    the largest aligned tile (capped for long sequences so the logits fit the
    v7x 64 MiB / v5e 16 MiB-default VMEM budgets)."""
    if n <= 1024:
        return n
    cap = 256 if n >= 2048 else 512
    for cand in (cap, 256, 128):
        if n % cand == 0:
            return cand
    # TODO(synk): flash/online-softmax K/V streaming for long, unaligned N.
    return n


def attention_pallas(x, w_qkv, w_proj, b_proj, *, num_heads):
    """x: (B, N, C);  w_qkv: (C, 3C) [in, out];  w_proj: (C, C);  b_proj: (1, C)."""
    B, N, C = x.shape
    H = num_heads
    assert C % H == 0, "dim must be divisible by num_heads"
    hd = C // H
    scale = hd ** (-0.5)
    dt = x.dtype

    # qkv weight columns are laid out [q | k | v]; within each block the column
    # index is already h*hd + d, matching the reference's concat(heads) order,
    # so plain (C, C) slices are all that is needed. Fold the softmax scale
    # into Wq on the host (no (tq, N) scale multiply inside the kernel).
    wq = (w_qkv[:, :C] * scale).astype(dt)
    wk = w_qkv[:, C:2 * C].astype(dt)
    wv = w_qkv[:, 2 * C:].astype(dt)
    wp = w_proj.astype(dt)
    bias = b_proj.astype(dt)

    tq = _query_tile(N)
    qt = N // tq

    # Explicit VMEM budget (double-buffered x/out blocks + resident weights +
    # K/V scratch + f32 softmax temporaries), with headroom, capped for v7x.
    itemsize = jnp.dtype(dt).itemsize
    est = (2 * (N * C + tq * C + 4 * C * C + C) * itemsize
           + 2 * N * C * itemsize
           + 4 * tq * N * 4 + 4 * tq * C * 4)
    vmem_limit = int(min(max(32 << 20, 2 * est), 48 << 20))

    kernel = functools.partial(_attention_kernel, num_heads=H, tq=tq)

    return pl.pallas_call(
        kernel,
        out_shape=jax.ShapeDtypeStruct((B, N, C), x.dtype),
        grid_spec=pltpu.PrefetchScalarGridSpec(
            num_scalar_prefetch=0,
            grid=(B, qt),
            in_specs=[
                # x: full sequence per batch; same block for every query tile
                # of a batch -> DMA'd once per batch.
                pl.BlockSpec((None, N, C), lambda b, qi: (b, 0, 0)),
                # Weights / bias: whole tensors, constant index_map -> DMA'd
                # once, VMEM-resident for the entire kernel.
                pl.BlockSpec((C, C), lambda b, qi: (0, 0)),   # wq (scaled)
                pl.BlockSpec((C, C), lambda b, qi: (0, 0)),   # wk
                pl.BlockSpec((C, C), lambda b, qi: (0, 0)),   # wv
                pl.BlockSpec((C, C), lambda b, qi: (0, 0)),   # wproj
                pl.BlockSpec((1, C), lambda b, qi: (0, 0)),   # bias
            ],
            out_specs=pl.BlockSpec((None, tq, C), lambda b, qi: (b, qi, 0)),
            scratch_shapes=[pltpu.VMEM((N, C), dt),           # K (all heads)
                            pltpu.VMEM((N, C), dt)],          # V (all heads)
        ),
        # B is independent ("parallel", feeds both v7x TensorCores); the query
        # tile axis carries the K/V-scratch dependence -> "arbitrary".
        compiler_params=pltpu.CompilerParams(
            dimension_semantics=("parallel", "arbitrary"),
            vmem_limit_bytes=vmem_limit),
    )(x, wq, wk, wv, wp, bias)


def attention_reference(x, w_qkv, w_proj, b_proj, *, num_heads):
    """Plain-JAX reference mirroring the PyTorch forward."""
    B, N, C = x.shape
    hd = C // num_heads
    scale = hd ** (-0.5)
    qkv = x @ w_qkv                                            # (B, N, 3C)
    qkv = qkv.reshape(B, N, 3, num_heads, hd).transpose(2, 0, 3, 1, 4)
    q, k, v = qkv[0], qkv[1], qkv[2]                           # (B, H, N, hd)
    attn = jnp.einsum('bhnd,bhmd->bhnm', q, k) * scale
    attn = jax.nn.softmax(attn, axis=-1)
    out = jnp.einsum('bhnm,bhmd->bhnd', attn, v)               # (B, H, N, hd)
    out = out.transpose(0, 2, 1, 3).reshape(B, N, C)
    return out @ w_proj + b_proj[0]


if __name__ == "__main__":
    # Small shapes consistent with the module: B=2, seq N=8, dim C=32, 8 heads.
    B, N, C = 2, 8, 32
    num_heads = 8

    key = jax.random.PRNGKey(0)
    kx, kqkv, kproj, kb = jax.random.split(key, 4)

    x = jax.random.normal(kx, (B, N, C), dtype=jnp.float32)
    # Deterministic "parameters" (linear weights stored as [in, out]).
    w_qkv = jax.random.normal(kqkv, (C, 3 * C), dtype=jnp.float32) * 0.05
    w_proj = jax.random.normal(kproj, (C, C), dtype=jnp.float32) * 0.05
    b_proj = jax.random.normal(kb, (1, C), dtype=jnp.float32) * 0.05

    ref = attention_reference(x, w_qkv, w_proj, b_proj, num_heads=num_heads)

    # f32 path: should match the reference tightly (exact softmax reciprocal).
    out = attention_pallas(x, w_qkv, w_proj, b_proj, num_heads=num_heads)
    out = jax.block_until_ready(out)
    assert out.shape == (B, N, C)
    assert jnp.allclose(out, ref, atol=1e-4, rtol=1e-4), "f32 mismatch vs reference"

    # bf16 path: same kernel, the caller just passes bf16 x (weights are cast
    # inside the wrapper) -> native bf16 MXU matmuls with f32 accumulation.
    out_bf16 = attention_pallas(x.astype(jnp.bfloat16), w_qkv, w_proj, b_proj,
                                num_heads=num_heads)
    out_bf16 = jax.block_until_ready(out_bf16)
    assert out_bf16.shape == (B, N, C)
    assert jnp.allclose(out_bf16.astype(jnp.float32), ref, atol=5e-2, rtol=5e-2), \
        "bf16 mismatch vs reference"

    print("KERNEL_OK")
</pallas_src>

<mosaic_0001>
module attributes {stable_mosaic.version = 11 : i64} {
  func.func @_attention_kernel(%arg0: i32, %arg1: i32, %arg2: memref<1x8x32xf32, #tpu.memory_space<vmem>>, %arg3: memref<32x32xf32, #tpu.memory_space<vmem>>, %arg4: memref<32x32xf32, #tpu.memory_space<vmem>>, %arg5: memref<32x32xf32, #tpu.memory_space<vmem>>, %arg6: memref<32x32xf32, #tpu.memory_space<vmem>>, %arg7: memref<1x32xf32, #tpu.memory_space<vmem>>, %arg8: memref<1x8x32xf32, #tpu.memory_space<vmem>>, %arg9: memref<8x32xf32, #tpu.memory_space<vmem>>, %arg10: memref<8x32xf32, #tpu.memory_space<vmem>>) attributes {dimension_semantics = [#tpu.dimension_semantics<parallel>, #tpu.dimension_semantics<arbitrary>], iteration_bounds = array<i64: 2, 1>, scalar_prefetch = 0 : i64, scratch_operands = 2 : i64, tpu.core_type = #tpu.core_type<tc>, window_params = [{transform_indices = @transform_0, window_bounds = array<i64: 1, 8, 32>}, {pipeline_mode = #tpu.pipeline_mode<synchronous>, transform_indices = @transform_1, window_bounds = array<i64: 32, 32>}, {pipeline_mode = #tpu.pipeline_mode<synchronous>, transform_indices = @transform_2, window_bounds = array<i64: 32, 32>}, {pipeline_mode = #tpu.pipeline_mode<synchronous>, transform_indices = @transform_3, window_bounds = array<i64: 32, 32>}, {pipeline_mode = #tpu.pipeline_mode<synchronous>, transform_indices = @transform_4, window_bounds = array<i64: 32, 32>}, {pipeline_mode = #tpu.pipeline_mode<synchronous>, transform_indices = @transform_5, window_bounds = array<i64: 1, 32>}, {transform_indices = @transform_6, window_bounds = array<i64: 1, 8, 32>}]} {
    %c0_i32 = arith.constant 0 : i32
    %0 = arith.cmpi eq, %arg1, %c0_i32 : i32
    %1 = arith.extui %0 : i1 to i32
    %c0_i32_0 = arith.constant 0 : i32
    %2 = arith.cmpi ne, %1, %c0_i32_0 : i32
    scf.if %2 {
      %c0_48 = arith.constant 0 : index
      %c0_49 = arith.constant 0 : index
      %c0_50 = arith.constant 0 : index
      %141 = vector.load %arg2[%c0_48, %c0_49, %c0_50] : memref<1x8x32xf32, #tpu.memory_space<vmem>>, vector<1x8x32xf32>
      %142 = vector.shape_cast %141 : vector<1x8x32xf32> to vector<8x32xf32>
      %c0_51 = arith.constant 0 : index
      %c0_52 = arith.constant 0 : index
      %143 = vector.load %arg4[%c0_51, %c0_52] : memref<32x32xf32, #tpu.memory_space<vmem>>, vector<32x32xf32>
      %cst_53 = arith.constant dense<0.000000e+00> : vector<8x32xf32>
      %144 = tpu.matmul %142, %143, %cst_53 {dimension_numbers = #tpu.dot_dimension_numbers<[1], [0], [0], [1], [0, 0, 1, 1], [], []>} : vector<8x32xf32>, vector<32x32xf32>, vector<8x32xf32> -> vector<8x32xf32>
      %c0_54 = arith.constant 0 : index
      %c0_55 = arith.constant 0 : index
      %145 = vector.load %arg9[%c0_54, %c0_55] : memref<8x32xf32, #tpu.memory_space<vmem>>, vector<8x32xf32>
      tpu.vector_store %arg9[%c0_54, %c0_55], %144 {strides = array<i32>} : memref<8x32xf32, #tpu.memory_space<vmem>>, vector<8x32xf32>,
      %c0_56 = arith.constant 0 : index
      %c0_57 = arith.constant 0 : index
      %146 = vector.load %arg5[%c0_56, %c0_57] : memref<32x32xf32, #tpu.memory_space<vmem>>, vector<32x32xf32>
      %cst_58 = arith.constant dense<0.000000e+00> : vector<8x32xf32>
      %147 = tpu.matmul %142, %146, %cst_58 {dimension_numbers = #tpu.dot_dimension_numbers<[1], [0], [0], [1], [0, 0, 1, 1], [], []>} : vector<8x32xf32>, vector<32x32xf32>, vector<8x32xf32> -> vector<8x32xf32>
      %c0_59 = arith.constant 0 : index
      %c0_60 = arith.constant 0 : index
      %148 = vector.load %arg10[%c0_59, %c0_60] : memref<8x32xf32, #tpu.memory_space<vmem>>, vector<8x32xf32>
      tpu.vector_store %arg10[%c0_59, %c0_60], %147 {strides = array<i32>} : memref<8x32xf32, #tpu.memory_space<vmem>>, vector<8x32xf32>,
    } else {
    }
    %c8_i32 = arith.constant 8 : i32
    %3 = arith.muli %arg1, %c8_i32 : i32
    %4 = tpu.assume_multiple %3, 8 : i32
    %c0 = arith.constant 0 : index
    %5 = arith.index_cast %4 : i32 to index
    %c0_1 = arith.constant 0 : index
    %6 = vector.load %arg2[%c0, %5, %c0_1] : memref<1x8x32xf32, #tpu.memory_space<vmem>>, vector<1x8x32xf32>
    %7 = vector.shape_cast %6 : vector<1x8x32xf32> to vector<8x32xf32>
    %c0_2 = arith.constant 0 : index
    %c0_3 = arith.constant 0 : index
    %8 = vector.load %arg3[%c0_2, %c0_3] : memref<32x32xf32, #tpu.memory_space<vmem>>, vector<32x32xf32>
    %cst = arith.constant dense<0.000000e+00> : vector<8x32xf32>
    %9 = tpu.matmul %7, %8, %cst {dimension_numbers = #tpu.dot_dimension_numbers<[1], [0], [0], [1], [0, 0, 1, 1], [], []>} : vector<8x32xf32>, vector<32x32xf32>, vector<8x32xf32> -> vector<8x32xf32>
    %c0_4 = arith.constant 0 : index
    %c0_5 = arith.constant 0 : index
    %10 = vector.load %arg9[%c0_4, %c0_5] : memref<8x32xf32, #tpu.memory_space<vmem>>, vector<8x32xf32>
    %c0_6 = arith.constant 0 : index
    %c0_7 = arith.constant 0 : index
    %11 = vector.load %arg10[%c0_6, %c0_7] : memref<8x32xf32, #tpu.memory_space<vmem>>, vector<8x32xf32>
    %12 = vector.extract_strided_slice %9 {offsets = [0, 0], sizes = [8, 4], strides = [1, 1]} : vector<8x32xf32> to vector<8x4xf32>
    %13 = vector.extract_strided_slice %10 {offsets = [0, 0], sizes = [8, 4], strides = [1, 1]} : vector<8x32xf32> to vector<8x4xf32>
    %14 = vector.extract_strided_slice %11 {offsets = [0, 0], sizes = [8, 4], strides = [1, 1]} : vector<8x32xf32> to vector<8x4xf32>
    %cst_8 = arith.constant dense<0.000000e+00> : vector<8x8xf32>
    %15 = tpu.matmul %12, %13, %cst_8 {dimension_numbers = #tpu.dot_dimension_numbers<[1], [1], [0], [0], [0, 0, 1, 0], [], []>} : vector<8x4xf32>, vector<8x4xf32>, vector<8x8xf32> -> vector<8x8xf32>
    %cst_9 = arith.constant dense<0xFF800000> : vector<8xf32>
    %16 = vector.multi_reduction <maximumf>, %15, %cst_9 [1] : vector<8x8xf32> to vector<8xf32>
    %17 = vector.shape_cast %16 : vector<8xf32> to vector<8x1xf32>
    %18 = vector.broadcast %17 : vector<8x1xf32> to vector<8x8xf32>
    %19 = arith.subf %15, %18 : vector<8x8xf32>
    %20 = math.exp %19 : vector<8x8xf32>
    %cst_10 = arith.constant dense<0.000000e+00> : vector<8xf32>
    %21 = vector.multi_reduction <add>, %20, %cst_10 [1] : vector<8x8xf32> to vector<8xf32>
    %22 = vector.shape_cast %21 : vector<8xf32> to vector<8x1xf32>
    %cst_11 = arith.constant dense<0.000000e+00> : vector<8x4xf32>
    %23 = tpu.matmul %20, %14, %cst_11 {dimension_numbers = #tpu.dot_dimension_numbers<[1], [0], [0], [1], [0, 0, 1, 1], [], []>} : vector<8x8xf32>, vector<8x4xf32>, vector<8x4xf32> -> vector<8x4xf32>
    %24 = tpu.reciprocal %22 : vector<8x1xf32> -> vector<8x1xf32>
    %25 = vector.broadcast %24 : vector<8x1xf32> to vector<8x4xf32>
    %26 = arith.mulf %23, %25 : vector<8x4xf32>
    %27 = vector.extract_strided_slice %9 {offsets = [0, 4], sizes = [8, 4], strides = [1, 1]} : vector<8x32xf32> to vector<8x4xf32>
    %28 = vector.extract_strided_slice %10 {offsets = [0, 4], sizes = [8, 4], strides = [1, 1]} : vector<8x32xf32> to vector<8x4xf32>
    %29 = vector.extract_strided_slice %11 {offsets = [0, 4], sizes = [8, 4], strides = [1, 1]} : vector<8x32xf32> to vector<8x4xf32>
    %cst_12 = arith.constant dense<0.000000e+00> : vector<8x8xf32>
    %30 = tpu.matmul %27, %28, %cst_12 {dimension_numbers = #tpu.dot_dimension_numbers<[1], [1], [0], [0], [0, 0, 1, 0], [], []>} : vector<8x4xf32>, vector<8x4xf32>, vector<8x8xf32> -> vector<8x8xf32>
    %cst_13 = arith.constant dense<0xFF800000> : vector<8xf32>
    %31 = vector.multi_reduction <maximumf>, %30, %cst_13 [1] : vector<8x8xf32> to vector<8xf32>
    %32 = vector.shape_cast %31 : vector<8xf32> to vector<8x1xf32>
    %33 = vector.broadcast %32 : vector<8x1xf32> to vector<8x8xf32>
    %34 = arith.subf %30, %33 : vector<8x8xf32>
    %35 = math.exp %34 : vector<8x8xf32>
    %cst_14 = arith.constant dense<0.000000e+00> : vector<8xf32>
    %36 = vector.multi_reduction <add>, %35, %cst_14 [1] : vector<8x8xf32> to vector<8xf32>
    %37 = vector.shape_cast %36 : vector<8xf32> to vector<8x1xf32>
    %cst_15 = arith.constant dense<0.000000e+00> : vector<8x4xf32>
    %38 = tpu.matmul %35, %29, %cst_15 {dimension_numbers = #tpu.dot_dimension_numbers<[1], [0], [0], [1], [0, 0, 1, 1], [], []>} : vector<8x8xf32>, vector<8x4xf32>, vector<8x4xf32> -> vector<8x4xf32>
    %39 = tpu.reciprocal %37 : vector<8x1xf32> -> vector<8x1xf32>
    %40 = vector.broadcast %39 : vector<8x1xf32> to vector<8x4xf32>
    %41 = arith.mulf %38, %40 : vector<8x4xf32>
    %42 = vector.extract_strided_slice %9 {offsets = [0, 8], sizes = [8, 4], strides = [1, 1]} : vector<8x32xf32> to vector<8x4xf32>
    %43 = vector.extract_strided_slice %10 {offsets = [0, 8], sizes = [8, 4], strides = [1, 1]} : vector<8x32xf32> to vector<8x4xf32>
    %44 = vector.extract_strided_slice %11 {offsets = [0, 8], sizes = [8, 4], strides = [1, 1]} : vector<8x32xf32> to vector<8x4xf32>
    %cst_16 = arith.constant dense<0.000000e+00> : vector<8x8xf32>
    %45 = tpu.matmul %42, %43, %cst_16 {dimension_numbers = #tpu.dot_dimension_numbers<[1], [1], [0], [0], [0, 0, 1, 0], [], []>} : vector<8x4xf32>, vector<8x4xf32>, vector<8x8xf32> -> vector<8x8xf32>
    %cst_17 = arith.constant dense<0xFF800000> : vector<8xf32>
    %46 = vector.multi_reduction <maximumf>, %45, %cst_17 [1] : vector<8x8xf32> to vector<8xf32>
    %47 = vector.shape_cast %46 : vector<8xf32> to vector<8x1xf32>
    %48 = vector.broadcast %47 : vector<8x1xf32> to vector<8x8xf32>
    %49 = arith.subf %45, %48 : vector<8x8xf32>
    %50 = math.exp %49 : vector<8x8xf32>
    %cst_18 = arith.constant dense<0.000000e+00> : vector<8xf32>
    %51 = vector.multi_reduction <add>, %50, %cst_18 [1] : vector<8x8xf32> to vector<8xf32>
    %52 = vector.shape_cast %51 : vector<8xf32> to vector<8x1xf32>
    %cst_19 = arith.constant dense<0.000000e+00> : vector<8x4xf32>
    %53 = tpu.matmul %50, %44, %cst_19 {dimension_numbers = #tpu.dot_dimension_numbers<[1], [0], [0], [1], [0, 0, 1, 1], [], []>} : vector<8x8xf32>, vector<8x4xf32>, vector<8x4xf32> -> vector<8x4xf32>
    %54 = tpu.reciprocal %52 : vector<8x1xf32> -> vector<8x1xf32>
    %55 = vector.broadcast %54 : vector<8x1xf32> to vector<8x4xf32>
    %56 = arith.mulf %53, %55 : vector<8x4xf32>
    %57 = vector.extract_strided_slice %9 {offsets = [0, 12], sizes = [8, 4], strides = [1, 1]} : vector<8x32xf32> to vector<8x4xf32>
    %58 = vector.extract_strided_slice %10 {offsets = [0, 12], sizes = [8, 4], strides = [1, 1]} : vector<8x32xf32> to vector<8x4xf32>
    %59 = vector.extract_strided_slice %11 {offsets = [0, 12], sizes = [8, 4], strides = [1, 1]} : vector<8x32xf32> to vector<8x4xf32>
    %cst_20 = arith.constant dense<0.000000e+00> : vector<8x8xf32>
    %60 = tpu.matmul %57, %58, %cst_20 {dimension_numbers = #tpu.dot_dimension_numbers<[1], [1], [0], [0], [0, 0, 1, 0], [], []>} : vector<8x4xf32>, vector<8x4xf32>, vector<8x8xf32> -> vector<8x8xf32>
    %cst_21 = arith.constant dense<0xFF800000> : vector<8xf32>
    %61 = vector.multi_reduction <maximumf>, %60, %cst_21 [1] : vector<8x8xf32> to vector<8xf32>
    %62 = vector.shape_cast %61 : vector<8xf32> to vector<8x1xf32>
    %63 = vector.broadcast %62 : vector<8x1xf32> to vector<8x8xf32>
    %64 = arith.subf %60, %63 : vector<8x8xf32>
    %65 = math.exp %64 : vector<8x8xf32>
    %cst_22 = arith.constant dense<0.000000e+00> : vector<8xf32>
    %66 = vector.multi_reduction <add>, %65, %cst_22 [1] : vector<8x8xf32> to vector<8xf32>
    %67 = vector.shape_cast %66 : vector<8xf32> to vector<8x1xf32>
    %cst_23 = arith.constant dense<0.000000e+00> : vector<8x4xf32>
    %68 = tpu.matmul %65, %59, %cst_23 {dimension_numbers = #tpu.dot_dimension_numbers<[1], [0], [0], [1], [0, 0, 1, 1], [], []>} : vector<8x8xf32>, vector<8x4xf32>, vector<8x4xf32> -> vector<8x4xf32>
    %69 = tpu.reciprocal %67 : vector<8x1xf32> -> vector<8x1xf32>
    %70 = vector.broadcast %69 : vector<8x1xf32> to vector<8x4xf32>
    %71 = arith.mulf %68, %70 : vector<8x4xf32>
    %72 = vector.extract_strided_slice %9 {offsets = [0, 16], sizes = [8, 4], strides = [1, 1]} : vector<8x32xf32> to vector<8x4xf32>
    %73 = vector.extract_strided_slice %10 {offsets = [0, 16], sizes = [8, 4], strides = [1, 1]} : vector<8x32xf32> to vector<8x4xf32>
    %74 = vector.extract_strided_slice %11 {offsets = [0, 16], sizes = [8, 4], strides = [1, 1]} : vector<8x32xf32> to vector<8x4xf32>
    %cst_24 = arith.constant dense<0.000000e+00> : vector<8x8xf32>
    %75 = tpu.matmul %72, %73, %cst_24 {dimension_numbers = #tpu.dot_dimension_numbers<[1], [1], [0], [0], [0, 0, 1, 0], [], []>} : vector<8x4xf32>, vector<8x4xf32>, vector<8x8xf32> -> vector<8x8xf32>
    %cst_25 = arith.constant dense<0xFF800000> : vector<8xf32>
    %76 = vector.multi_reduction <maximumf>, %75, %cst_25 [1] : vector<8x8xf32> to vector<8xf32>
    %77 = vector.shape_cast %76 : vector<8xf32> to vector<8x1xf32>
    %78 = vector.broadcast %77 : vector<8x1xf32> to vector<8x8xf32>
    %79 = arith.subf %75, %78 : vector<8x8xf32>
    %80 = math.exp %79 : vector<8x8xf32>
    %cst_26 = arith.constant dense<0.000000e+00> : vector<8xf32>
    %81 = vector.multi_reduction <add>, %80, %cst_26 [1] : vector<8x8xf32> to vector<8xf32>
    %82 = vector.shape_cast %81 : vector<8xf32> to vector<8x1xf32>
    %cst_27 = arith.constant dense<0.000000e+00> : vector<8x4xf32>
    %83 = tpu.matmul %80, %74, %cst_27 {dimension_numbers = #tpu.dot_dimension_numbers<[1], [0], [0], [1], [0, 0, 1, 1], [], []>} : vector<8x8xf32>, vector<8x4xf32>, vector<8x4xf32> -> vector<8x4xf32>
    %84 = tpu.reciprocal %82 : vector<8x1xf32> -> vector<8x1xf32>
    %85 = vector.broadcast %84 : vector<8x1xf32> to vector<8x4xf32>
    %86 = arith.mulf %83, %85 : vector<8x4xf32>
    %87 = vector.extract_strided_slice %9 {offsets = [0, 20], sizes = [8, 4], strides = [1, 1]} : vector<8x32xf32> to vector<8x4xf32>
    %88 = vector.extract_strided_slice %10 {offsets = [0, 20], sizes = [8, 4], strides = [1, 1]} : vector<8x32xf32> to vector<8x4xf32>
    %89 = vector.extract_strided_slice %11 {offsets = [0, 20], sizes = [8, 4], strides = [1, 1]} : vector<8x32xf32> to vector<8x4xf32>
    %cst_28 = arith.constant dense<0.000000e+00> : vector<8x8xf32>
    %90 = tpu.matmul %87, %88, %cst_28 {dimension_numbers = #tpu.dot_dimension_numbers<[1], [1], [0], [0], [0, 0, 1, 0], [], []>} : vector<8x4xf32>, vector<8x4xf32>, vector<8x8xf32> -> vector<8x8xf32>
    %cst_29 = arith.constant dense<0xFF800000> : vector<8xf32>
    %91 = vector.multi_reduction <maximumf>, %90, %cst_29 [1] : vector<8x8xf32> to vector<8xf32>
    %92 = vector.shape_cast %91 : vector<8xf32> to vector<8x1xf32>
    %93 = vector.broadcast %92 : vector<8x1xf32> to vector<8x8xf32>
    %94 = arith.subf %90, %93 : vector<8x8xf32>
    %95 = math.exp %94 : vector<8x8xf32>
    %cst_30 = arith.constant dense<0.000000e+00> : vector<8xf32>
    %96 = vector.multi_reduction <add>, %95, %cst_30 [1] : vector<8x8xf32> to vector<8xf32>
    %97 = vector.shape_cast %96 : vector<8xf32> to vector<8x1xf32>
    %cst_31 = arith.constant dense<0.000000e+00> : vector<8x4xf32>
    %98 = tpu.matmul %95, %89, %cst_31 {dimension_numbers = #tpu.dot_dimension_numbers<[1], [0], [0], [1], [0, 0, 1, 1], [], []>} : vector<8x8xf32>, vector<8x4xf32>, vector<8x4xf32> -> vector<8x4xf32>
    %99 = tpu.reciprocal %97 : vector<8x1xf32> -> vector<8x1xf32>
    %100 = vector.broadcast %99 : vector<8x1xf32> to vector<8x4xf32>
    %101 = arith.mulf %98, %100 : vector<8x4xf32>
    %102 = vector.extract_strided_slice %9 {offsets = [0, 24], sizes = [8, 4], strides = [1, 1]} : vector<8x32xf32> to vector<8x4xf32>
    %103 = vector.extract_strided_slice %10 {offsets = [0, 24], sizes = [8, 4], strides = [1, 1]} : vector<8x32xf32> to vector<8x4xf32>
    %104 = vector.extract_strided_slice %11 {offsets = [0, 24], sizes = [8, 4], strides = [1, 1]} : vector<8x32xf32> to vector<8x4xf32>
    %cst_32 = arith.constant dense<0.000000e+00> : vector<8x8xf32>
    %105 = tpu.matmul %102, %103, %cst_32 {dimension_numbers = #tpu.dot_dimension_numbers<[1], [1], [0], [0], [0, 0, 1, 0], [], []>} : vector<8x4xf32>, vector<8x4xf32>, vector<8x8xf32> -> vector<8x8xf32>
    %cst_33 = arith.constant dense<0xFF800000> : vector<8xf32>
    %106 = vector.multi_reduction <maximumf>, %105, %cst_33 [1] : vector<8x8xf32> to vector<8xf32>
    %107 = vector.shape_cast %106 : vector<8xf32> to vector<8x1xf32>
    %108 = vector.broadcast %107 : vector<8x1xf32> to vector<8x8xf32>
    %109 = arith.subf %105, %108 : vector<8x8xf32>
    %110 = math.exp %109 : vector<8x8xf32>
    %cst_34 = arith.constant dense<0.000000e+00> : vector<8xf32>
    %111 = vector.multi_reduction <add>, %110, %cst_34 [1] : vector<8x8xf32> to vector<8xf32>
    %112 = vector.shape_cast %111 : vector<8xf32> to vector<8x1xf32>
    %cst_35 = arith.constant dense<0.000000e+00> : vector<8x4xf32>
    %113 = tpu.matmul %110, %104, %cst_35 {dimension_numbers = #tpu.dot_dimension_numbers<[1], [0], [0], [1], [0, 0, 1, 1], [], []>} : vector<8x8xf32>, vector<8x4xf32>, vector<8x4xf32> -> vector<8x4xf32>
    %114 = tpu.reciprocal %112 : vector<8x1xf32> -> vector<8x1xf32>
    %115 = vector.broadcast %114 : vector<8x1xf32> to vector<8x4xf32>
    %116 = arith.mulf %113, %115 : vector<8x4xf32>
    %117 = vector.extract_strided_slice %9 {offsets = [0, 28], sizes = [8, 4], strides = [1, 1]} : vector<8x32xf32> to vector<8x4xf32>
    %118 = vector.extract_strided_slice %10 {offsets = [0, 28], sizes = [8, 4], strides = [1, 1]} : vector<8x32xf32> to vector<8x4xf32>
    %119 = vector.extract_strided_slice %11 {offsets = [0, 28], sizes = [8, 4], strides = [1, 1]} : vector<8x32xf32> to vector<8x4xf32>
    %cst_36 = arith.constant dense<0.000000e+00> : vector<8x8xf32>
    %120 = tpu.matmul %117, %118, %cst_36 {dimension_numbers = #tpu.dot_dimension_numbers<[1], [1], [0], [0], [0, 0, 1, 0], [], []>} : vector<8x4xf32>, vector<8x4xf32>, vector<8x8xf32> -> vector<8x8xf32>
    %cst_37 = arith.constant dense<0xFF800000> : vector<8xf32>
    %121 = vector.multi_reduction <maximumf>, %120, %cst_37 [1] : vector<8x8xf32> to vector<8xf32>
    %122 = vector.shape_cast %121 : vector<8xf32> to vector<8x1xf32>
    %123 = vector.broadcast %122 : vector<8x1xf32> to vector<8x8xf32>
    %124 = arith.subf %120, %123 : vector<8x8xf32>
    %125 = math.exp %124 : vector<8x8xf32>
    %cst_38 = arith.constant dense<0.000000e+00> : vector<8xf32>
    %126 = vector.multi_reduction <add>, %125, %cst_38 [1] : vector<8x8xf32> to vector<8xf32>
    %127 = vector.shape_cast %126 : vector<8xf32> to vector<8x1xf32>
    %cst_39 = arith.constant dense<0.000000e+00> : vector<8x4xf32>
    %128 = tpu.matmul %125, %119, %cst_39 {dimension_numbers = #tpu.dot_dimension_numbers<[1], [0], [0], [1], [0, 0, 1, 1], [], []>} : vector<8x8xf32>, vector<8x4xf32>, vector<8x4xf32> -> vector<8x4xf32>
    %129 = tpu.reciprocal %127 : vector<8x1xf32> -> vector<8x1xf32>
    %130 = vector.broadcast %129 : vector<8x1xf32> to vector<8x4xf32>
    %131 = arith.mulf %128, %130 : vector<8x4xf32>
    %132 = tpu.concatenate %26, %41, %56, %71, %86, %101, %116, %131 in 1 : vector<8x4xf32>, vector<8x4xf32>, vector<8x4xf32>, vector<8x4xf32>, vector<8x4xf32>, vector<8x4xf32>, vector<8x4xf32>, vector<8x4xf32> -> vector<8x32xf32>
    %c0_40 = arith.constant 0 : index
    %c0_41 = arith.constant 0 : index
    %133 = vector.load %arg6[%c0_40, %c0_41] : memref<32x32xf32, #tpu.memory_space<vmem>>, vector<32x32xf32>
    %cst_42 = arith.constant dense<0.000000e+00> : vector<8x32xf32>
    %134 = tpu.matmul %132, %133, %cst_42 {dimension_numbers = #tpu.dot_dimension_numbers<[1], [0], [0], [1], [0, 0, 1, 1], [], []>} : vector<8x32xf32>, vector<32x32xf32>, vector<8x32xf32> -> vector<8x32xf32>
    %c0_43 = arith.constant 0 : index
    %c0_44 = arith.constant 0 : index
    %135 = vector.load %arg7[%c0_43, %c0_44] : memref<1x32xf32, #tpu.memory_space<vmem>>, vector<1x32xf32>
    %136 = vector.broadcast %135 : vector<1x32xf32> to vector<8x32xf32>
    %137 = arith.addf %134, %136 : vector<8x32xf32>
    %c0_45 = arith.constant 0 : index
    %c0_46 = arith.constant 0 : index
    %c0_47 = arith.constant 0 : index
    %138 = vector.load %arg8[%c0_45, %c0_46, %c0_47] : memref<1x8x32xf32, #tpu.memory_space<vmem>>, vector<1x8x32xf32>
    %139 = vector.shape_cast %138 : vector<1x8x32xf32> to vector<8x32xf32>
    %140 = vector.shape_cast %137 : vector<8x32xf32> to vector<1x8x32xf32>
    tpu.vector_store %arg8[%c0_45, %c0_46, %c0_47], %140 {strides = array<i32>} : memref<1x8x32xf32, #tpu.memory_space<vmem>>, vector<1x8x32xf32>,
    return
  }
  func.func @transform_0(%arg0: i32, %arg1: i32) -> (i32, i32, i32) {
    %c0_i32 = arith.constant 0 : i32
    %c0_i32_0 = arith.constant 0 : i32
    %c0_i32_1 = arith.constant 0 : i32
    return %arg0, %c0_i32, %c0_i32_0 : i32, i32, i32
  }
  func.func @transform_1(%arg0: i32, %arg1: i32) -> (i32, i32) {
    %c0_i32 = arith.constant 0 : i32
    %c0_i32_0 = arith.constant 0 : i32
    %c0_i32_1 = arith.constant 0 : i32
    return %c0_i32, %c0_i32_0 : i32, i32
  }
  func.func @transform_2(%arg0: i32, %arg1: i32) -> (i32, i32) {
    %c0_i32 = arith.constant 0 : i32
    %c0_i32_0 = arith.constant 0 : i32
    %c0_i32_1 = arith.constant 0 : i32
    return %c0_i32, %c0_i32_0 : i32, i32
  }
  func.func @transform_3(%arg0: i32, %arg1: i32) -> (i32, i32) {
    %c0_i32 = arith.constant 0 : i32
    %c0_i32_0 = arith.constant 0 : i32
    %c0_i32_1 = arith.constant 0 : i32
    return %c0_i32, %c0_i32_0 : i32, i32
  }
  func.func @transform_4(%arg0: i32, %arg1: i32) -> (i32, i32) {
    %c0_i32 = arith.constant 0 : i32
    %c0_i32_0 = arith.constant 0 : i32
    %c0_i32_1 = arith.constant 0 : i32
    return %c0_i32, %c0_i32_0 : i32, i32
  }
  func.func @transform_5(%arg0: i32, %arg1: i32) -> (i32, i32) {
    %c0_i32 = arith.constant 0 : i32
    %c0_i32_0 = arith.constant 0 : i32
    %c0_i32_1 = arith.constant 0 : i32
    return %c0_i32, %c0_i32_0 : i32, i32
  }
  func.func @transform_6(%arg0: i32, %arg1: i32) -> (i32, i32, i32) {
    %c0_i32 = arith.constant 0 : i32
    %c0_i32_0 = arith.constant 0 : i32
    return %arg0, %arg1, %c0_i32 : i32, i32, i32
  }
}

</mosaic_0001>

<llo_original>
// kernel: tpu_custom_call.1
$region0: #{tpu_custom_call.1}
  #allocation0 [shape = 'u32[]', space=smem, size = 0x4, offset = 0x4, fixed_abs, tag = 'smem constant byte address 0x4 - core index']
  #allocation1 [shape = 'u32[144,128]{1,0:T(1,128)}', space=vmem, size = 0x12000, scoped, tag = 'internal scratch']
  #allocation2 [shape = 'f32[8,32]{1,0:T(8,128)}', space=vmem, size = 0x1000, scoped, tag = 'scratch operand']
  #allocation3 [shape = 'f32[8,32]{1,0:T(8,128)}', space=vmem, size = 0x1000, scoped, tag = 'scratch operand']
  %s0 = inlined_call_operand.hbm [shape: f32[2,8,32], index: 0, kind: input, shape index: {}]
  %s1 = inlined_call_operand.hbm [shape: f32[32,32], index: 1, kind: input, shape index: {}]
  %s2 = inlined_call_operand.hbm [shape: f32[32,32], index: 2, kind: input, shape index: {}]
  %s3 = inlined_call_operand.hbm [shape: f32[32,32], index: 3, kind: input, shape index: {}]
  %s4 = inlined_call_operand.hbm [shape: f32[32,32], index: 4, kind: input, shape index: {}]
  %s5 = inlined_call_operand.vmem [shape: f32[1,32], index: 5, kind: input, shape index: {}]
  %s6 = inlined_call_operand.hbm [shape: f32[2,8,32], index: 6, kind: output, shape index: {}]
  %s7 = sld [smem:[#allocation0]]
  $region81: #{tpu_custom_call.1} parent=0
    _
  %s9 = ssub.s32 1, %s7
  %s10 = scalar_select 0, %s9, %s7
  $region1: #{tpu_custom_call.1} parent=0
    #allocation4 [shape = 'u8[8192]{0}', space=vmem, size = 0x2000, scoped, tag = 'input window, operand 0']
    #allocation5 [shape = 's32[2]{0}', space=sflag, size = 0x8, scoped, tag = 'scoped memory for tpu_custom_call.1']
    #allocation6 [shape = 's32[2]{0}', space=sflag, size = 0x8, scoped, tag = 'scoped memory for tpu_custom_call.1']
    #allocation7 [shape = 'u8[16384]{0}', space=vmem, size = 0x4000, scoped, tag = 'input window, operand 1, single buffered']
    #allocation8 [shape = 's32[1]{0}', space=sflag, size = 0x4, scoped, tag = 'scoped memory for tpu_custom_call.1']
    #allocation9 [shape = 'u8[16384]{0}', space=vmem, size = 0x4000, scoped, tag = 'input window, operand 2, single buffered']
    #allocation10 [shape = 'u8[16384]{0}', space=vmem, size = 0x4000, scoped, tag = 'input window, operand 3, single buffered']
    #allocation11 [shape = 's32[1]{0}', space=sflag, size = 0x4, scoped, tag = 'scoped memory for tpu_custom_call.1']
    #allocation12 [shape = 'u8[16384]{0}', space=vmem, size = 0x4000, scoped, tag = 'input window, operand 4, single buffered']
    #allocation13 [shape = 'u8[8192]{0}', space=vmem, size = 0x2000, scoped, tag = 'output window, operand 0']
    %11 = vsyncpa [#allocation5], 0
    %s12 = scalar_lea.sflag [#allocation5], 1
    %13 = vsyncpa %s12, 0
    %14 = vsyncpa [#allocation8], 0
    %15 = vsyncpa [#allocation11], 0
    %16 = vsyncpa [#allocation6], 0
    %s17 = scalar_lea.sflag [#allocation6], 1
    %18 = vsyncpa %s17, 0
    loop: start=0, step=1, limit=4
    $region2: #{tpu_custom_call.1} parent=1 // loop_pre_header
      _
    $region3: #{tpu_custom_call.1} parent=1 // loop_header
      %s20 = sphi 0, %s24
      %p21 = scmp.ge.s32.totalorder %s20, 4
      %s27 = sphi 0, %s39
      %s28 = sphi 0, %s35
      %s29 = sphi 0, %s27
      %s30 = sphi 0, %s28
      %s31 = sphi 0, %s29
      %s32 = sphi 0, %s30
      %s42 = sphi 0, %s44
      %s45 = sphi 0, %s42
      %s46 = sphi 0, %s45
      %s62 = sphi 0, %s46
      %s66 = sphi 0, %s66
      %s68 = sphi 0, %s66
      %s69 = sphi 0, %s68
      %s83 = sphi 0, %s69
      %s87 = sphi 0, %s87
      %s89 = sphi 0, %s87
      %s90 = sphi 0, %s89
      %s104 = sphi 0, %s90
      %s108 = sphi 0, %s108
      %s110 = sphi 0, %s108
      %s111 = sphi 0, %s110
      %s125 = sphi 0, %s111
      %s129 = sphi 0, %s129
      %s131 = sphi 0, %s129
      %s132 = sphi 0, %s131
      %s146 = sphi 0, %s132
      %s150 = sphi 0, %s150
      %s152 = sphi 0, %s150
      %s153 = sphi 0, %s152
      %s167 = sphi 0, %s153
      %s175 = sphi 0, %s177
      %s178 = sphi 0, %s175
      %s179 = sphi 0, %s178
      %s195 = sphi 0, %s179
    $region4: #{tpu_custom_call.1} parent=1 // loop_header_branch
      %23 = sbr.rel (%p21) target = $region8
    $region5: #{tpu_custom_call.1} parent=1 // loop_body
      %s25 = ssub.s32 %s20, 1
      %s26 = ssub.s32 %s20, 2
      %s33 = sadd.s32 1, %s28
      %p34 = scmp.ge.s32.totalorder %s33, 1
      %s35 = scalar_select %p34, 0, %s33
      %s36 = sadd.s32 1, %s27
      %s37 = scalar_select %p34, %s36, %s27
      %p38 = scmp.ge.s32.totalorder %s37, 2
      %s39 = scalar_select %p38, 0, %s37
      %s40 = ssub.s32 %s27, %s39
      %p41 = scmp.eq.s32.totalorder %s40, 0
      %s43 = sadd.s32 %s42, 1
      %s44 = scalar_select %p41, %s42, %s43
      %p47 = pneg %p41
      %p48 = scmp.eq.s32.totalorder %s20, 1
      %p49 = por %p47, %p48
      %p50 = scmp.ne.s32.totalorder %s42, %s45
      %p51 = scmp.eq.s32.totalorder %s20, 0
      %p52 = por %p50, %p51
      %p53 = scmp.ne.s32.totalorder %s42, %s45
      %p54 = scmp.eq.s32.totalorder %s25, 1
      %p55 = por %p53, %p54
      %p56 = scmp.ne.s32.totalorder %s45, %s46
      %p57 = scmp.eq.s32.totalorder %s25, 0
      %p58 = por %p56, %p57
      %p59 = scmp.ne.s32.totalorder %s45, %s46
      %p60 = scmp.eq.s32.totalorder %s26, 1
      %p61 = por %p59, %p60
      %p63 = scmp.ne.s32.totalorder %s46, %s62
      %p64 = scmp.eq.s32.totalorder %s26, 0
      %p65 = por %p63, %p64
      %s67 = sadd.s32 %s66, 1
      %p70 = scmp.eq.s32.totalorder %s20, 1
      %p71 = scmp.ne.s32.totalorder %s66, %s68
      %p72 = scmp.eq.s32.totalorder %s20, 0
      %p73 = por %p71, %p72
      %p74 = scmp.ne.s32.totalorder %s66, %s68
      %p75 = scmp.eq.s32.totalorder %s25, 1
      %p76 = por %p74, %p75
      %p77 = scmp.ne.s32.totalorder %s68, %s69
      %p78 = scmp.eq.s32.totalorder %s25, 0
      %p79 = por %p77, %p78
      %p80 = scmp.ne.s32.totalorder %s68, %s69
      %p81 = scmp.eq.s32.totalorder %s26, 1
      %p82 = por %p80, %p81
      %p84 = scmp.ne.s32.totalorder %s69, %s83
      %p85 = scmp.eq.s32.totalorder %s26, 0
      %p86 = por %p84, %p85
      %s88 = sadd.s32 %s87, 1
      %p91 = scmp.eq.s32.totalorder %s20, 1
      %p92 = scmp.ne.s32.totalorder %s87, %s89
      %p93 = scmp.eq.s32.totalorder %s20, 0
      %p94 = por %p92, %p93
      %p95 = scmp.ne.s32.totalorder %s87, %s89
      %p96 = scmp.eq.s32.totalorder %s25, 1
      %p97 = por %p95, %p96
      %p98 = scmp.ne.s32.totalorder %s89, %s90
      %p99 = scmp.eq.s32.totalorder %s25, 0
      %p100 = por %p98, %p99
      %p101 = scmp.ne.s32.totalorder %s89, %s90
      %p102 = scmp.eq.s32.totalorder %s26, 1
      %p103 = por %p101, %p102
      %p105 = scmp.ne.s32.totalorder %s90, %s104
      %p106 = scmp.eq.s32.totalorder %s26, 0
      %p107 = por %p105, %p106
      %s109 = sadd.s32 %s108, 1
      %p112 = scmp.eq.s32.totalorder %s20, 1
      %p113 = scmp.ne.s32.totalorder %s108, %s110
      %p114 = scmp.eq.s32.totalorder %s20, 0
      %p115 = por %p113, %p114
      %p116 = scmp.ne.s32.totalorder %s108, %s110
      %p117 = scmp.eq.s32.totalorder %s25, 1
      %p118 = por %p116, %p117
      %p119 = scmp.ne.s32.totalorder %s110, %s111
      %p120 = scmp.eq.s32.totalorder %s25, 0
      %p121 = por %p119, %p120
      %p122 = scmp.ne.s32.totalorder %s110, %s111
      %p123 = scmp.eq.s32.totalorder %s26, 1
      %p124 = por %p122, %p123
      %p126 = scmp.ne.s32.totalorder %s111, %s125
      %p127 = scmp.eq.s32.totalorder %s26, 0
      %p128 = por %p126, %p127
      %s130 = sadd.s32 %s129, 1
      %p133 = scmp.eq.s32.totalorder %s20, 1
      %p134 = scmp.ne.s32.totalorder %s129, %s131
      %p135 = scmp.eq.s32.totalorder %s20, 0
      %p136 = por %p134, %p135
      %p137 = scmp.ne.s32.totalorder %s129, %s131
      %p138 = scmp.eq.s32.totalorder %s25, 1
      %p139 = por %p137, %p138
      %p140 = scmp.ne.s32.totalorder %s131, %s132
      %p141 = scmp.eq.s32.totalorder %s25, 0
      %p142 = por %p140, %p141
      %p143 = scmp.ne.s32.totalorder %s131, %s132
      %p144 = scmp.eq.s32.totalorder %s26, 1
      %p145 = por %p143, %p144
      %p147 = scmp.ne.s32.totalorder %s132, %s146
      %p148 = scmp.eq.s32.totalorder %s26, 0
      %p149 = por %p147, %p148
      %s151 = sadd.s32 %s150, 1
      %p154 = scmp.eq.s32.totalorder %s20, 1
      %p155 = scmp.ne.s32.totalorder %s150, %s152
      %p156 = scmp.eq.s32.totalorder %s20, 0
      %p157 = por %p155, %p156
      %p158 = scmp.ne.s32.totalorder %s150, %s152
      %p159 = scmp.eq.s32.totalorder %s25, 1
      %p160 = por %p158, %p159
      %p161 = scmp.ne.s32.totalorder %s152, %s153
      %p162 = scmp.eq.s32.totalorder %s25, 0
      %p163 = por %p161, %p162
      %p164 = scmp.ne.s32.totalorder %s152, %s153
      %p165 = scmp.eq.s32.totalorder %s26, 1
      %p166 = por %p164, %p165
      %p168 = scmp.ne.s32.totalorder %s153, %s167
      %p169 = scmp.eq.s32.totalorder %s26, 0
      %p170 = por %p168, %p169
      %s171 = ssub.s32 %s27, %s39
      %s172 = ssub.s32 %s28, %s35
      %s173 = sor.u32 %s171, %s172
      %p174 = scmp.eq.s32.totalorder %s173, 0
      %s176 = sadd.s32 %s175, 1
      %s177 = scalar_select %p174, %s175, %s176
      %p180 = pneg %p174
      %p181 = scmp.eq.s32.totalorder %s20, 1
      %p182 = por %p180, %p181
      %p183 = scmp.ne.s32.totalorder %s175, %s178
      %p184 = scmp.eq.s32.totalorder %s20, 0
      %p185 = por %p183, %p184
      %p186 = scmp.ne.s32.totalorder %s175, %s178
      %p187 = scmp.eq.s32.totalorder %s25, 1
      %p188 = por %p186, %p187
      %p189 = scmp.ne.s32.totalorder %s178, %s179
      %p190 = scmp.eq.s32.totalorder %s25, 0
      %p191 = por %p189, %p190
      %p192 = scmp.ne.s32.totalorder %s178, %s179
      %p193 = scmp.eq.s32.totalorder %s26, 1
      %p194 = por %p192, %p193
      %p196 = scmp.ne.s32.totalorder %s179, %s195
      %p197 = scmp.eq.s32.totalorder %s26, 0
      %p198 = por %p196, %p197
      %p199 = scmp.le.s32.totalorder 1, %s20
      %p200 = scmp.lt.s32.totalorder %s20, 3
      %p201 = pnand %p199, %p200
      %p202 = pneg %p201
      // Predicated region
      $region9: #{tpu_custom_call.1} parent=5 // pred_check
        _
      $region10: #{tpu_custom_call.1} parent=5 // pred_check_branch
        %204 = sbr.rel (%p201) target = $region12
      $region11: #{tpu_custom_call.1} parent=5 // pred_region
        %s205 = ssub.s32 %s20, 1
        // Predicated region
        $region13: #{tpu_custom_call.1} parent=11 // pred_check
          %p206 = pneg %p79
        $region14: #{tpu_custom_call.1} parent=11 // pred_check_branch
          %208 = sbr.rel (%p206) target = $region16
        $region15: #{tpu_custom_call.1} parent=11 // pred_region
          %s210 = ssub.s32 512, 512
          %211 = vsyncadd [#allocation8], %s210
          %s212 = sshll.u32 [#allocation7], 4
          %s213 = int_to_ptr.vmem [resolvable:$true] %s212
          %218 = dma.hbm_to_vmem [thread:$0]  %s1, 512, %s213, [#allocation8], 128, 128, 8
        $region16: #{tpu_custom_call.1} parent=11 // pred_fallthru
          _
        // Predicated region
        $region17: #{tpu_custom_call.1} parent=11 // pred_check
          %p219 = pneg %p100
        $region18: #{tpu_custom_call.1} parent=11 // pred_check_branch
          %221 = sbr.rel (%p219) target = $region20
        $region19: #{tpu_custom_call.1} parent=11 // pred_region
          %s223 = ssub.s32 512, 512
          %224 = vsyncadd [#allocation8], %s223
          %s225 = sshll.u32 [#allocation9], 4
          %s226 = int_to_ptr.vmem [resolvable:$true] %s225
          %231 = dma.hbm_to_vmem [thread:$0]  %s2, 512, %s226, [#allocation8], 128, 128, 8
        $region20: #{tpu_custom_call.1} parent=11 // pred_fallthru
          _
        // Predicated region
        $region21: #{tpu_custom_call.1} parent=11 // pred_check
          %p232 = pneg %p121
        $region22: #{tpu_custom_call.1} parent=11 // pred_check_branch
          %234 = sbr.rel (%p232) target = $region24
        $region23: #{tpu_custom_call.1} parent=11 // pred_region
          %s236 = ssub.s32 512, 512
          %237 = vsyncadd [#allocation11], %s236
          %s238 = sshll.u32 [#allocation10], 4
          %s239 = int_to_ptr.vmem [resolvable:$true] %s238
          %244 = dma.hbm_to_vmem [thread:$0]  %s3, 512, %s239, [#allocation11], 128, 128, 8
        $region24: #{tpu_custom_call.1} parent=11 // pred_fallthru
          _
        // Predicated region
        $region25: #{tpu_custom_call.1} parent=11 // pred_check
          %p245 = pneg %p142
        $region26: #{tpu_custom_call.1} parent=11 // pred_check_branch
          %247 = sbr.rel (%p245) target = $region28
        $region27: #{tpu_custom_call.1} parent=11 // pred_region
          %s249 = ssub.s32 512, 512
          %250 = vsyncadd [#allocation11], %s249
          %s251 = sshll.u32 [#allocation12], 4
          %s252 = int_to_ptr.vmem [resolvable:$true] %s251
          %257 = dma.hbm_to_vmem [thread:$0]  %s4, 512, %s252, [#allocation11], 128, 128, 8
        $region28: #{tpu_custom_call.1} parent=11 // pred_fallthru
          _
        // Predicated region
        $region29: #{tpu_custom_call.1} parent=11 // pred_check
          %p258 = pneg %p163
        $region30: #{tpu_custom_call.1} parent=11 // pred_check_branch
          %260 = sbr.rel (%p258) target = $region32
        $region31: #{tpu_custom_call.1} parent=11 // pred_region
          _
        $region32: #{tpu_custom_call.1} parent=11 // pred_fallthru
          _
      $region12: #{tpu_custom_call.1} parent=5 // pred_fallthru
        _
      %p261 = scmp.lt.s32.totalorder %s20, 2
      // Predicated region
      $region33: #{tpu_custom_call.1} parent=5 // pred_check
        %p262 = pneg %p261
      $region34: #{tpu_custom_call.1} parent=5 // pred_check_branch
        %264 = sbr.rel (%p262) target = $region36
      $region35: #{tpu_custom_call.1} parent=5 // pred_region
        // Predicated region
        $region37: #{tpu_custom_call.1} parent=35 // pred_check
          %p265 = pneg %p52
        $region38: #{tpu_custom_call.1} parent=35 // pred_check_branch
          %267 = sbr.rel (%p265) target = $region40
        $region39: #{tpu_custom_call.1} parent=35 // pred_region
          %s268 = sand.u32 %s42, 1
          %s269 = scalar_lea.sflag [#allocation5], %s268
          %s270 = sand.u32 %s42, 1
          %s271 = smul.addr %s270, 8
          %s272 = scalar_lea.vmem [#allocation4], %s271
          %s274 = ssub.s32 128, 128
          %275 = vsyncadd %s269, %s274
          %s276 = smul.addr %s27, 128
          %s277 = scalar_lea.hbm %s0, %s276
          %s279 = sshll.u32 %s272, 4
          %s280 = int_to_ptr.vmem [resolvable:$true] %s279
          %282 = dma.hbm_to_vmem [thread:$0]  %s277, 128, %s280, %s269
        $region40: #{tpu_custom_call.1} parent=35 // pred_fallthru
          _
      $region36: #{tpu_custom_call.1} parent=5 // pred_fallthru
        _
      %p283 = scmp.le.s32.totalorder 1, %s20
      %p284 = scmp.lt.s32.totalorder %s20, 3
      %p285 = pnand %p283, %p284
      %p286 = pneg %p285
      // Predicated region
      $region41: #{tpu_custom_call.1} parent=5 // pred_check
        _
      $region42: #{tpu_custom_call.1} parent=5 // pred_check_branch
        %288 = sbr.rel (%p285) target = $region44
      $region43: #{tpu_custom_call.1} parent=5 // pred_region
        %s289 = ssub.s32 %s20, 1
        %s290 = sand.u32 %s45, 1
        %s291 = scalar_lea.sflag [#allocation5], %s290
        %s292 = sand.u32 %s45, 1
        %s293 = smul.addr %s292, 8
        %s294 = scalar_lea.vmem [#allocation4], %s293
        // Predicated region
        $region45: #{tpu_custom_call.1} parent=43 // pred_check
          %p295 = pneg %p58
        $region46: #{tpu_custom_call.1} parent=43 // pred_check_branch
          %297 = sbr.rel (%p295) target = $region48
        $region47: #{tpu_custom_call.1} parent=43 // pred_region
          %298 = dma.done %s291, 128
        $region48: #{tpu_custom_call.1} parent=43 // pred_fallthru
          _
        // Predicated region
        $region49: #{tpu_custom_call.1} parent=43 // pred_check
          %p299 = pneg %p79
        $region50: #{tpu_custom_call.1} parent=43 // pred_check_branch
          %301 = sbr.rel (%p299) target = $region52
        $region51: #{tpu_custom_call.1} parent=43 // pred_region
          %302 = dma.done [#allocation8], 512
        $region52: #{tpu_custom_call.1} parent=43 // pred_fallthru
          _
        // Predicated region
        $region53: #{tpu_custom_call.1} parent=43 // pred_check
          %p303 = pneg %p100
        $region54: #{tpu_custom_call.1} parent=43 // pred_check_branch
          %305 = sbr.rel (%p303) target = $region56
        $region55: #{tpu_custom_call.1} parent=43 // pred_region
          %306 = dma.done [#allocation8], 512
        $region56: #{tpu_custom_call.1} parent=43 // pred_fallthru
          _
        // Predicated region
        $region57: #{tpu_custom_call.1} parent=43 // pred_check
          %p307 = pneg %p121
        $region58: #{tpu_custom_call.1} parent=43 // pred_check_branch
          %309 = sbr.rel (%p307) target = $region60
        $region59: #{tpu_custom_call.1} parent=43 // pred_region
          %310 = dma.done [#allocation11], 512
        $region60: #{tpu_custom_call.1} parent=43 // pred_fallthru
          _
        // Predicated region
        $region61: #{tpu_custom_call.1} parent=43 // pred_check
          %p311 = pneg %p142
        $region62: #{tpu_custom_call.1} parent=43 // pred_check_branch
          %313 = sbr.rel (%p311) target = $region64
        $region63: #{tpu_custom_call.1} parent=43 // pred_region
          %314 = dma.done [#allocation11], 512
        $region64: #{tpu_custom_call.1} parent=43 // pred_fallthru
          _
        %s315 = sand.u32 %s45, 1
        %s316 = scalar_lea.sflag [#allocation5], %s315
        %s317 = sand.u32 %s45, 1
        %s318 = smul.addr %s317, 8
        %s319 = scalar_lea.vmem [#allocation4], %s318
        %p320 = pneg %p58
        %p321 = pneg %p55
        %p322 = pneg %p79
        %p323 = pneg %p76
        %p324 = pneg %p100
        %p325 = pneg %p97
        %p326 = pneg %p121
        %p327 = pneg %p118
        %p328 = pneg %p142
        %p329 = pneg %p139
        %p330 = pneg %p163
        %p331 = pneg %p160
        %p332 = pneg %p191
        %p333 = pneg %p188
        %s334 = sand.u32 %s178, 1
        %s335 = scalar_lea.sflag [#allocation6], %s334
        %s336 = sand.u32 %s178, 1
        %s337 = smul.addr %s336, 8
        %s338 = scalar_lea.vmem [#allocation13], %s337
        %p339 = scmp.eq.s32.totalorder %s30, 0
        // Predicated region
        $region65: #{tpu_custom_call.1} parent=43 // pred_check
          %p340 = pneg %p339
        $region66: #{tpu_custom_call.1} parent=43 // pred_check_branch
          %342 = sbr.rel (%p340) target = $region68
        $region67: #{tpu_custom_call.1} parent=43 // pred_region
          %v343 = vld [vmem:[%s294] sm:$0xff]
          %v344 = vld [vmem:[#allocation9] sm:$0xff]
          %v345 = vld [vmem:[#allocation9 + $0x8] sm:$0xff]
          %v346 = vld [vmem:[#allocation9 + $0x10] sm:$0xff]
          %v347 = vld [vmem:[#allocation9 + $0x18] sm:$0xff]
          %vm348 = vcmask 261120
          %v350 = vsel %vm348, %v343, 0
          %352 = vmatprep.subr.mxu0 0.0
          %353 = vmatpush1.msra.mxu0 %v344
          %354 = vmatprep.subr.mxu0 0.0
          %355 = vmatpush1.msra.mxu0 %v345
          %356 = vmatprep.subr.mxu0 0.0
          %357 = vmatpush1.msra.mxu0 %v346
          %358 = vmatprep.subr.mxu0 0.0
          %359 = vmatpush1.msra.mxu0 %v347
          %360 = vmatprep.subr.mxu0 0.0
          %361 = vmatpush1.msra.mxu0 0.0
          %362 = vmatprep.subr.mxu0 0.0
          %363 = vmatpush1.msra.mxu0 0.0
          %364 = vmatprep.subr.mxu0 0.0
          %365 = vmatpush1.msra.mxu0 0.0
          %366 = vmatprep.subr.mxu0 0.0
          %367 = vmatpush1.msra.mxu0 0.0
          %368 = vmatprep.subr.mxu0 0.0
          %369 = vmatpush1.msra.mxu0 0.0
          %370 = vmatprep.subr.mxu0 0.0
          %371 = vmatpush1.msra.mxu0 0.0
          %372 = vmatprep.subr.mxu0 0.0
          %373 = vmatpush1.msra.mxu0 0.0
          %374 = vmatprep.subr.mxu0 0.0
          %375 = vmatpush1.msra.mxu0 0.0
          %376 = vmatprep.subr.mxu0 0.0
          %377 = vmatpush1.msra.mxu0 0.0
          %378 = vmatprep.subr.mxu0 0.0
          %379 = vmatpush1.msra.mxu0 0.0
          %380 = vmatprep.subr.mxu0 0.0
          %381 = vmatpush1.msra.mxu0 0.0
          %382 = vmatprep.subr.mxu0 0.0
          %383 = vmatpush1.msra.mxu0 0.0
          %384 = vmatprep.subr.mxu0 0.0
          %385 = vmatpush1.msra.mxu0 0.0
          %386 = vmatprep.subr.mxu0 0.0
          %387 = vmatpush1.msra.mxu0 0.0
          %388 = vmatprep.subr.mxu0 0.0
          %389 = vmatpush1.msra.mxu0 0.0
          %390 = vmatprep.subr.mxu0 0.0
          %391 = vmatpush1.msra.mxu0 0.0
          %392 = vmatprep.subr.mxu0 0.0
          %393 = vmatpush1.msra.mxu0 0.0
          %394 = vmatprep.subr.mxu0 0.0
          %395 = vmatpush1.msra.mxu0 0.0
          %396 = vmatprep.subr.mxu0 0.0
          %397 = vmatpush1.msra.mxu0 0.0
          %398 = vmatprep.subr.mxu0 0.0
          %399 = vmatpush1.msra.mxu0 0.0
          %400 = vmatprep.subr.mxu0 0.0
          %401 = vmatpush1.msra.mxu0 0.0
          %402 = vmatprep.subr.mxu0 0.0
          %403 = vmatpush1.msra.mxu0 0.0
          %404 = vmatprep.subr.mxu0 0.0
          %405 = vmatpush1.msra.mxu0 0.0
          %406 = vmatprep.subr.mxu0 0.0
          %407 = vmatpush1.msra.mxu0 0.0
          %408 = vmatprep.subr.mxu0 0.0
          %409 = vmatpush1.msra.mxu0 0.0
          %410 = vmatprep.subr.mxu0 0.0
          %411 = vmatpush1.msra.mxu0 0.0
          %412 = vmatprep.subr.mxu0 0.0
          %413 = vmatpush1.msra.mxu0 0.0
          %414 = vmatprep.subr.mxu0 0.0
          %415 = vmatpush1.msra.mxu0 0.0
          %416 = vmatprep.mubr.f32.mxu0 0.0
          %417 = vmatmul.mubr.f32.gmra.mrb[0].mxu0 %v350
          %v418 = vpop.f32.mrb[0].mxu0
          %v419 = vadd.f32 0.0, %v418
          %v420 = vpop.f32.mrb[0].mxu0
          %421 = vdwg.mxu0
          %422 = vst.msk [vmem:[#allocation2] sm:$0xff] %vm348, %v419
          %v423 = vld [vmem:[#allocation10] sm:$0xff]
          %v424 = vld [vmem:[#allocation10 + $0x8] sm:$0xff]
          %v425 = vld [vmem:[#allocation10 + $0x10] sm:$0xff]
          %v426 = vld [vmem:[#allocation10 + $0x18] sm:$0xff]
          %427 = vmatprep.subr.mxu0 0.0
          %428 = vmatpush1.msra.mxu0 %v423
          %429 = vmatprep.subr.mxu0 0.0
          %430 = vmatpush1.msra.mxu0 %v424
          %431 = vmatprep.subr.mxu0 0.0
          %432 = vmatpush1.msra.mxu0 %v425
          %433 = vmatprep.subr.mxu0 0.0
          %434 = vmatpush1.msra.mxu0 %v426
          %435 = vmatprep.subr.mxu0 0.0
          %436 = vmatpush1.msra.mxu0 0.0
          %437 = vmatprep.subr.mxu0 0.0
          %438 = vmatpush1.msra.mxu0 0.0
          %439 = vmatprep.subr.mxu0 0.0
          %440 = vmatpush1.msra.mxu0 0.0
          %441 = vmatprep.subr.mxu0 0.0
          %442 = vmatpush1.msra.mxu0 0.0
          %443 = vmatprep.subr.mxu0 0.0
          %444 = vmatpush1.msra.mxu0 0.0
          %445 = vmatprep.subr.mxu0 0.0
          %446 = vmatpush1.msra.mxu0 0.0
          %447 = vmatprep.subr.mxu0 0.0
          %448 = vmatpush1.msra.mxu0 0.0
          %449 = vmatprep.subr.mxu0 0.0
          %450 = vmatpush1.msra.mxu0 0.0
          %451 = vmatprep.subr.mxu0 0.0
          %452 = vmatpush1.msra.mxu0 0.0
          %453 = vmatprep.subr.mxu0 0.0
          %454 = vmatpush1.msra.mxu0 0.0
          %455 = vmatprep.subr.mxu0 0.0
          %456 = vmatpush1.msra.mxu0 0.0
          %457 = vmatprep.subr.mxu0 0.0
          %458 = vmatpush1.msra.mxu0 0.0
          %459 = vmatprep.subr.mxu0 0.0
          %460 = vmatpush1.msra.mxu0 0.0
          %461 = vmatprep.subr.mxu0 0.0
          %462 = vmatpush1.msra.mxu0 0.0
          %463 = vmatprep.subr.mxu0 0.0
          %464 = vmatpush1.msra.mxu0 0.0
          %465 = vmatprep.subr.mxu0 0.0
          %466 = vmatpush1.msra.mxu0 0.0
          %467 = vmatprep.subr.mxu0 0.0
          %468 = vmatpush1.msra.mxu0 0.0
          %469 = vmatprep.subr.mxu0 0.0
          %470 = vmatpush1.msra.mxu0 0.0
          %471 = vmatprep.subr.mxu0 0.0
          %472 = vmatpush1.msra.mxu0 0.0
          %473 = vmatprep.subr.mxu0 0.0
          %474 = vmatpush1.msra.mxu0 0.0
          %475 = vmatprep.subr.mxu0 0.0
          %476 = vmatpush1.msra.mxu0 0.0
          %477 = vmatprep.subr.mxu0 0.0
          %478 = vmatpush1.msra.mxu0 0.0
          %479 = vmatprep.subr.mxu0 0.0
          %480 = vmatpush1.msra.mxu0 0.0
          %481 = vmatprep.subr.mxu0 0.0
          %482 = vmatpush1.msra.mxu0 0.0
          %483 = vmatprep.subr.mxu0 0.0
          %484 = vmatpush1.msra.mxu0 0.0
          %485 = vmatprep.subr.mxu0 0.0
          %486 = vmatpush1.msra.mxu0 0.0
          %487 = vmatprep.subr.mxu0 0.0
          %488 = vmatpush1.msra.mxu0 0.0
          %489 = vmatprep.subr.mxu0 0.0
          %490 = vmatpush1.msra.mxu0 0.0
          %491 = vmatprep.mubr.f32.mxu0 0.0
          %492 = vmatmul.mubr.f32.gmra.mrb[0].mxu0 %v350
          %v493 = vpop.f32.mrb[0].mxu0
          %v494 = vadd.f32 0.0, %v493
          %v495 = vpop.f32.mrb[0].mxu0
          %496 = vdwg.mxu0
          %497 = vst.msk [vmem:[#allocation3] sm:$0xff] %vm348, %v494
        $region68: #{tpu_custom_call.1} parent=43 // pred_fallthru
          _
        %s498 = smul.u32 %s30, 8
        %s499 = scalar_lea.vmem %s294, %s498 [#allocation4]
        %v500 = vld [vmem:[%s499] sm:$0xff]
        %v501 = vld [vmem:[#allocation7] sm:$0xff]
        %v502 = vld [vmem:[#allocation7 + $0x8] sm:$0xff]
        %v503 = vld [vmem:[#allocation7 + $0x10] sm:$0xff]
        %v504 = vld [vmem:[#allocation7 + $0x18] sm:$0xff]
        %vm505 = vcmask 261120
        %v507 = vsel %vm505, %v500, 0
        %509 = vmatprep.subr.mxu0 0.0
        %510 = vmatpush1.msra.mxu0 %v501
        %511 = vmatprep.subr.mxu0 0.0
        %512 = vmatpush1.msra.mxu0 %v502
        %513 = vmatprep.subr.mxu0 0.0
        %514 = vmatpush1.msra.mxu0 %v503
        %515 = vmatprep.subr.mxu0 0.0
        %516 = vmatpush1.msra.mxu0 %v504
        %517 = vmatprep.subr.mxu0 0.0
        %518 = vmatpush1.msra.mxu0 0.0
        %519 = vmatprep.subr.mxu0 0.0
        %520 = vmatpush1.msra.mxu0 0.0
        %521 = vmatprep.subr.mxu0 0.0
        %522 = vmatpush1.msra.mxu0 0.0
        %523 = vmatprep.subr.mxu0 0.0
        %524 = vmatpush1.msra.mxu0 0.0
        %525 = vmatprep.subr.mxu0 0.0
        %526 = vmatpush1.msra.mxu0 0.0
        %527 = vmatprep.subr.mxu0 0.0
        %528 = vmatpush1.msra.mxu0 0.0
        %529 = vmatprep.subr.mxu0 0.0
        %530 = vmatpush1.msra.mxu0 0.0
        %531 = vmatprep.subr.mxu0 0.0
        %532 = vmatpush1.msra.mxu0 0.0
        %533 = vmatprep.subr.mxu0 0.0
        %534 = vmatpush1.msra.mxu0 0.0
        %535 = vmatprep.subr.mxu0 0.0
        %536 = vmatpush1.msra.mxu0 0.0
        %537 = vmatprep.subr.mxu0 0.0
        %538 = vmatpush1.msra.mxu0 0.0
        %539 = vmatprep.subr.mxu0 0.0
        %540 = vmatpush1.msra.mxu0 0.0
        %541 = vmatprep.subr.mxu0 0.0
        %542 = vmatpush1.msra.mxu0 0.0
        %543 = vmatprep.subr.mxu0 0.0
        %544 = vmatpush1.msra.mxu0 0.0
        %545 = vmatprep.subr.mxu0 0.0
        %546 = vmatpush1.msra.mxu0 0.0
        %547 = vmatprep.subr.mxu0 0.0
        %548 = vmatpush1.msra.mxu0 0.0
        %549 = vmatprep.subr.mxu0 0.0
        %550 = vmatpush1.msra.mxu0 0.0
        %551 = vmatprep.subr.mxu0 0.0
        %552 = vmatpush1.msra.mxu0 0.0
        %553 = vmatprep.subr.mxu0 0.0
        %554 = vmatpush1.msra.mxu0 0.0
        %555 = vmatprep.subr.mxu0 0.0
        %556 = vmatpush1.msra.mxu0 0.0
        %557 = vmatprep.subr.mxu0 0.0
        %558 = vmatpush1.msra.mxu0 0.0
        %559 = vmatprep.subr.mxu0 0.0
        %560 = vmatpush1.msra.mxu0 0.0
        %561 = vmatprep.subr.mxu0 0.0
        %562 = vmatpush1.msra.mxu0 0.0
        %563 = vmatprep.subr.mxu0 0.0
        %564 = vmatpush1.msra.mxu0 0.0
        %565 = vmatprep.subr.mxu0 0.0
        %566 = vmatpush1.msra.mxu0 0.0
        %567 = vmatprep.subr.mxu0 0.0
        %568 = vmatpush1.msra.mxu0 0.0
        %569 = vmatprep.subr.mxu0 0.0
        %570 = vmatpush1.msra.mxu0 0.0
        %571 = vmatprep.subr.mxu0 0.0
        %572 = vmatpush1.msra.mxu0 0.0
        %573 = vmatprep.mubr.f32.mxu0 0.0
        %574 = vmatmul.mubr.f32.gmra.mrb[0].mxu0 %v507
        %v575 = vpop.f32.mrb[0].mxu0
        %v576 = vadd.f32 0.0, %v575
        %v577 = vpop.f32.mrb[0].mxu0
        %578 = vdwg.mxu0
        %v579 = vld [vmem:[#allocation2] sm:$0xff]
        %v580 = vld [vmem:[#allocation3] sm:$0xff]
        %vm581 = vcmask 31744
        %v583 = vsel %vm581, %v576, 0
        %v586 = vsel %vm581, %v579, 0
        %588 = vmatprep.subr.mxu0 0.0
        %589 = vmatpush1.xpose.msra.mxu0 %v586
        %590 = vmatprep.subr.mxu0 0.0
        %591 = vmatpush1.xpose.msra.mxu0 0.0
        %592 = vmatprep.subr.mxu0 0.0
        %593 = vmatpush1.xpose.msra.mxu0 0.0
        %594 = vmatprep.subr.mxu0 0.0
        %595 = vmatpush1.xpose.msra.mxu0 0.0
        %596 = vmatprep.subr.mxu0 0.0
        %597 = vmatpush1.xpose.msra.mxu0 0.0
        %598 = vmatprep.subr.mxu0 0.0
        %599 = vmatpush1.xpose.msra.mxu0 0.0
        %600 = vmatprep.subr.mxu0 0.0
        %601 = vmatpush1.xpose.msra.mxu0 0.0
        %602 = vmatprep.subr.mxu0 0.0
        %603 = vmatpush1.xpose.msra.mxu0 0.0
        %604 = vmatprep.subr.mxu0 0.0
        %605 = vmatpush1.xpose.msra.mxu0 0.0
        %606 = vmatprep.subr.mxu0 0.0
        %607 = vmatpush1.xpose.msra.mxu0 0.0
        %608 = vmatprep.subr.mxu0 0.0
        %609 = vmatpush1.xpose.msra.mxu0 0.0
        %610 = vmatprep.subr.mxu0 0.0
        %611 = vmatpush1.xpose.msra.mxu0 0.0
        %612 = vmatprep.subr.mxu0 0.0
        %613 = vmatpush1.xpose.msra.mxu0 0.0
        %614 = vmatprep.subr.mxu0 0.0
        %615 = vmatpush1.xpose.msra.mxu0 0.0
        %616 = vmatprep.subr.mxu0 0.0
        %617 = vmatpush1.xpose.msra.mxu0 0.0
        %618 = vmatprep.subr.mxu0 0.0
        %619 = vmatpush1.xpose.msra.mxu0 0.0
        %620 = vmatprep.subr.mxu0 0.0
        %621 = vmatpush1.xpose.msra.mxu0 0.0
        %622 = vmatprep.subr.mxu0 0.0
        %623 = vmatpush1.xpose.msra.mxu0 0.0
        %624 = vmatprep.subr.mxu0 0.0
        %625 = vmatpush1.xpose.msra.mxu0 0.0
        %626 = vmatprep.subr.mxu0 0.0
        %627 = vmatpush1.xpose.msra.mxu0 0.0
        %628 = vmatprep.subr.mxu0 0.0
        %629 = vmatpush1.xpose.msra.mxu0 0.0
        %630 = vmatprep.subr.mxu0 0.0
        %631 = vmatpush1.xpose.msra.mxu0 0.0
        %632 = vmatprep.subr.mxu0 0.0
        %633 = vmatpush1.xpose.msra.mxu0 0.0
        %634 = vmatprep.subr.mxu0 0.0
        %635 = vmatpush1.xpose.msra.mxu0 0.0
        %636 = vmatprep.subr.mxu0 0.0
        %637 = vmatpush1.xpose.msra.mxu0 0.0
        %638 = vmatprep.subr.mxu0 0.0
        %639 = vmatpush1.xpose.msra.mxu0 0.0
        %640 = vmatprep.subr.mxu0 0.0
        %641 = vmatpush1.xpose.msra.mxu0 0.0
        %642 = vmatprep.subr.mxu0 0.0
        %643 = vmatpush1.xpose.msra.mxu0 0.0
        %644 = vmatprep.subr.mxu0 0.0
        %645 = vmatpush1.xpose.msra.mxu0 0.0
        %646 = vmatprep.subr.mxu0 0.0
        %647 = vmatpush1.xpose.msra.mxu0 0.0
        %648 = vmatprep.subr.mxu0 0.0
        %649 = vmatpush1.xpose.msra.mxu0 0.0
        %650 = vmatprep.subr.mxu0 0.0
        %651 = vmatpush1.xpose.msra.mxu0 0.0
        %652 = vmatprep.mubr.f32.mxu0 0.0
        %653 = vmatmul.mubr.f32.gmra.mrb[0].mxu0 %v583
        %v654 = vpop.f32.mrb[0].mxu0
        %v655 = vadd.f32 0.0, %v654
        %v656 = vpop.f32.mrb[0].mxu0
        %657 = vdwg.mxu0
        %vm658 = vcmask 64512
        %v659 = vsel %vm658, %v655, -inf
        %660 = vmax.xlane.f32.xlu0 %v659
        %v661 = vpop.xlane.xlu0 %660
        %v662 = vsub.f32 %v655, %v661
        %v663 = vmul.f32 %v662, 1.442695
        %v664 = vpow.pop %v663
        %v665 = vsel %vm658, %v664, 0.0
        %666 = vadd.xlane.f32.xlu0 %v665
        %v667 = vpop.xlane.xlu0 %666
        %v669 = vsel %vm658, %v664, 0
        %671 = vmatprep.subr.mxu0 0.0
        %672 = vmatpush1.msra.mxu0 %v580
        %673 = vmatprep.subr.mxu0 0.0
        %674 = vmatpush1.msra.mxu0 0.0
        %675 = vmatprep.subr.mxu0 0.0
        %676 = vmatpush1.msra.mxu0 0.0
        %677 = vmatprep.subr.mxu0 0.0
        %678 = vmatpush1.msra.mxu0 0.0
        %679 = vmatprep.subr.mxu0 0.0
        %680 = vmatpush1.msra.mxu0 0.0
        %681 = vmatprep.subr.mxu0 0.0
        %682 = vmatpush1.msra.mxu0 0.0
        %683 = vmatprep.subr.mxu0 0.0
        %684 = vmatpush1.msra.mxu0 0.0
        %685 = vmatprep.subr.mxu0 0.0
        %686 = vmatpush1.msra.mxu0 0.0
        %687 = vmatprep.subr.mxu0 0.0
        %688 = vmatpush1.msra.mxu0 0.0
        %689 = vmatprep.subr.mxu0 0.0
        %690 = vmatpush1.msra.mxu0 0.0
        %691 = vmatprep.subr.mxu0 0.0
        %692 = vmatpush1.msra.mxu0 0.0
        %693 = vmatprep.subr.mxu0 0.0
        %694 = vmatpush1.msra.mxu0 0.0
        %695 = vmatprep.subr.mxu0 0.0
        %696 = vmatpush1.msra.mxu0 0.0
        %697 = vmatprep.subr.mxu0 0.0
        %698 = vmatpush1.msra.mxu0 0.0
        %699 = vmatprep.subr.mxu0 0.0
        %700 = vmatpush1.msra.mxu0 0.0
        %701 = vmatprep.subr.mxu0 0.0
        %702 = vmatpush1.msra.mxu0 0.0
        %703 = vmatprep.subr.mxu0 0.0
        %704 = vmatpush1.msra.mxu0 0.0
        %705 = vmatprep.subr.mxu0 0.0
        %706 = vmatpush1.msra.mxu0 0.0
        %707 = vmatprep.subr.mxu0 0.0
        %708 = vmatpush1.msra.mxu0 0.0
        %709 = vmatprep.subr.mxu0 0.0
        %710 = vmatpush1.msra.mxu0 0.0
        %711 = vmatprep.subr.mxu0 0.0
        %712 = vmatpush1.msra.mxu0 0.0
        %713 = vmatprep.subr.mxu0 0.0
        %714 = vmatpush1.msra.mxu0 0.0
        %715 = vmatprep.subr.mxu0 0.0
        %716 = vmatpush1.msra.mxu0 0.0
        %717 = vmatprep.subr.mxu0 0.0
        %718 = vmatpush1.msra.mxu0 0.0
        %719 = vmatprep.subr.mxu0 0.0
        %720 = vmatpush1.msra.mxu0 0.0
        %721 = vmatprep.subr.mxu0 0.0
        %722 = vmatpush1.msra.mxu0 0.0
        %723 = vmatprep.subr.mxu0 0.0
        %724 = vmatpush1.msra.mxu0 0.0
        %725 = vmatprep.subr.mxu0 0.0
        %726 = vmatpush1.msra.mxu0 0.0
        %727 = vmatprep.subr.mxu0 0.0
        %728 = vmatpush1.msra.mxu0 0.0
        %729 = vmatprep.subr.mxu0 0.0
        %730 = vmatpush1.msra.mxu0 0.0
        %731 = vmatprep.subr.mxu0 0.0
        %732 = vmatpush1.msra.mxu0 0.0
        %733 = vmatprep.subr.mxu0 0.0
        %734 = vmatpush1.msra.mxu0 0.0
        %735 = vmatprep.mubr.f32.mxu0 0.0
        %736 = vmatmul.mubr.f32.gmra.mrb[0].mxu0 %v669
        %v737 = vpop.f32.mrb[0].mxu0
        %v738 = vadd.f32 0.0, %v737
        %v739 = vpop.f32.mrb[0].mxu0
        %740 = vdwg.mxu0
        %v741 = vrcp.pop %v667
        %v742 = vmul.f32 %v738, %v741
        %743 = vrot.lane.b32.xlu0 %v576, 124
        %v744 = vpop.permute.xlu0 %743
        %745 = vrot.lane.b32.xlu0 %v579, 124
        %v746 = vpop.permute.xlu0 %745
        %v747 = vsel %vm581, %v744, 0
        %v749 = vsel %vm581, %v746, 0
        %751 = vmatprep.subr.mxu0 0.0
        %752 = vmatpush1.xpose.msra.mxu0 %v749
        %753 = vmatprep.subr.mxu0 0.0
        %754 = vmatpush1.xpose.msra.mxu0 0.0
        %755 = vmatprep.subr.mxu0 0.0
        %756 = vmatpush1.xpose.msra.mxu0 0.0
        %757 = vmatprep.subr.mxu0 0.0
        %758 = vmatpush1.xpose.msra.mxu0 0.0
        %759 = vmatprep.subr.mxu0 0.0
        %760 = vmatpush1.xpose.msra.mxu0 0.0
        %761 = vmatprep.subr.mxu0 0.0
        %762 = vmatpush1.xpose.msra.mxu0 0.0
        %763 = vmatprep.subr.mxu0 0.0
        %764 = vmatpush1.xpose.msra.mxu0 0.0
        %765 = vmatprep.subr.mxu0 0.0
        %766 = vmatpush1.xpose.msra.mxu0 0.0
        %767 = vmatprep.subr.mxu0 0.0
        %768 = vmatpush1.xpose.msra.mxu0 0.0
        %769 = vmatprep.subr.mxu0 0.0
        %770 = vmatpush1.xpose.msra.mxu0 0.0
        %771 = vmatprep.subr.mxu0 0.0
        %772 = vmatpush1.xpose.msra.mxu0 0.0
        %773 = vmatprep.subr.mxu0 0.0
        %774 = vmatpush1.xpose.msra.mxu0 0.0
        %775 = vmatprep.subr.mxu0 0.0
        %776 = vmatpush1.xpose.msra.mxu0 0.0
        %777 = vmatprep.subr.mxu0 0.0
        %778 = vmatpush1.xpose.msra.mxu0 0.0
        %779 = vmatprep.subr.mxu0 0.0
        %780 = vmatpush1.xpose.msra.mxu0 0.0
        %781 = vmatprep.subr.mxu0 0.0
        %782 = vmatpush1.xpose.msra.mxu0 0.0
        %783 = vmatprep.subr.mxu0 0.0
        %784 = vmatpush1.xpose.msra.mxu0 0.0
        %785 = vmatprep.subr.mxu0 0.0
        %786 = vmatpush1.xpose.msra.mxu0 0.0
        %787 = vmatprep.subr.mxu0 0.0
        %788 = vmatpush1.xpose.msra.mxu0 0.0
        %789 = vmatprep.subr.mxu0 0.0
        %790 = vmatpush1.xpose.msra.mxu0 0.0
        %791 = vmatprep.subr.mxu0 0.0
        %792 = vmatpush1.xpose.msra.mxu0 0.0
        %793 = vmatprep.subr.mxu0 0.0
        %794 = vmatpush1.xpose.msra.mxu0 0.0
        %795 = vmatprep.subr.mxu0 0.0
        %796 = vmatpush1.xpose.msra.mxu0 0.0
        %797 = vmatprep.subr.mxu0 0.0
        %798 = vmatpush1.xpose.msra.mxu0 0.0
        %799 = vmatprep.subr.mxu0 0.0
        %800 = vmatpush1.xpose.msra.mxu0 0.0
        %801 = vmatprep.subr.mxu0 0.0
        %802 = vmatpush1.xpose.msra.mxu0 0.0
        %803 = vmatprep.subr.mxu0 0.0
        %804 = vmatpush1.xpose.msra.mxu0 0.0
        %805 = vmatprep.subr.mxu0 0.0
        %806 = vmatpush1.xpose.msra.mxu0 0.0
        %807 = vmatprep.subr.mxu0 0.0
        %808 = vmatpush1.xpose.msra.mxu0 0.0
        %809 = vmatprep.subr.mxu0 0.0
        %810 = vmatpush1.xpose.msra.mxu0 0.0
        %811 = vmatprep.subr.mxu0 0.0
        %812 = vmatpush1.xpose.msra.mxu0 0.0
        %813 = vmatprep.subr.mxu0 0.0
        %814 = vmatpush1.xpose.msra.mxu0 0.0
        %815 = vmatprep.mubr.f32.mxu0 0.0
        %816 = vmatmul.mubr.f32.gmra.mrb[0].mxu0 %v747
        %v817 = vpop.f32.mrb[0].mxu0
        %v818 = vadd.f32 0.0, %v817
        %v819 = vpop.f32.mrb[0].mxu0
        %820 = vdwg.mxu0
        %v821 = vsel %vm658, %v818, -inf
        %822 = vmax.xlane.f32.xlu0 %v821
        %v823 = vpop.xlane.xlu0 %822
        %v824 = vsub.f32 %v818, %v823
        %v825 = vmul.f32 %v824, 1.442695
        %v826 = vpow.pop %v825
        %v827 = vsel %vm658, %v826, 0.0
        %828 = vadd.xlane.f32.xlu0 %v827
        %v829 = vpop.xlane.xlu0 %828
        %831 = vrot.lane.b32.xlu0 %v580, 124
        %v832 = vpop.permute.xlu0 %831
        %v835 = vsel %vm658, %v826, 0
        %837 = vmatprep.subr.mxu0 0.0
        %838 = vmatpush1.msra.mxu0 %v832
        %839 = vmatprep.subr.mxu0 0.0
        %840 = vmatpush1.msra.mxu0 0.0
        %841 = vmatprep.subr.mxu0 0.0
        %842 = vmatpush1.msra.mxu0 0.0
        %843 = vmatprep.subr.mxu0 0.0
        %844 = vmatpush1.msra.mxu0 0.0
        %845 = vmatprep.subr.mxu0 0.0
        %846 = vmatpush1.msra.mxu0 0.0
        %847 = vmatprep.subr.mxu0 0.0
        %848 = vmatpush1.msra.mxu0 0.0
        %849 = vmatprep.subr.mxu0 0.0
        %850 = vmatpush1.msra.mxu0 0.0
        %851 = vmatprep.subr.mxu0 0.0
        %852 = vmatpush1.msra.mxu0 0.0
        %853 = vmatprep.subr.mxu0 0.0
        %854 = vmatpush1.msra.mxu0 0.0
        %855 = vmatprep.subr.mxu0 0.0
        %856 = vmatpush1.msra.mxu0 0.0
        %857 = vmatprep.subr.mxu0 0.0
        %858 = vmatpush1.msra.mxu0 0.0
        %859 = vmatprep.subr.mxu0 0.0
        %860 = vmatpush1.msra.mxu0 0.0
        %861 = vmatprep.subr.mxu0 0.0
        %862 = vmatpush1.msra.mxu0 0.0
        %863 = vmatprep.subr.mxu0 0.0
        %864 = vmatpush1.msra.mxu0 0.0
        %865 = vmatprep.subr.mxu0 0.0
        %866 = vmatpush1.msra.mxu0 0.0
        %867 = vmatprep.subr.mxu0 0.0
        %868 = vmatpush1.msra.mxu0 0.0
        %869 = vmatprep.subr.mxu0 0.0
        %870 = vmatpush1.msra.mxu0 0.0
        %871 = vmatprep.subr.mxu0 0.0
        %872 = vmatpush1.msra.mxu0 0.0
        %873 = vmatprep.subr.mxu0 0.0
        %874 = vmatpush1.msra.mxu0 0.0
        %875 = vmatprep.subr.mxu0 0.0
        %876 = vmatpush1.msra.mxu0 0.0
        %877 = vmatprep.subr.mxu0 0.0
        %878 = vmatpush1.msra.mxu0 0.0
        %879 = vmatprep.subr.mxu0 0.0
        %880 = vmatpush1.msra.mxu0 0.0
        %881 = vmatprep.subr.mxu0 0.0
        %882 = vmatpush1.msra.mxu0 0.0
        %883 = vmatprep.subr.mxu0 0.0
        %884 = vmatpush1.msra.mxu0 0.0
        %885 = vmatprep.subr.mxu0 0.0
        %886 = vmatpush1.msra.mxu0 0.0
        %887 = vmatprep.subr.mxu0 0.0
        %888 = vmatpush1.msra.mxu0 0.0
        %889 = vmatprep.subr.mxu0 0.0
        %890 = vmatpush1.msra.mxu0 0.0
        %891 = vmatprep.subr.mxu0 0.0
        %892 = vmatpush1.msra.mxu0 0.0
        %893 = vmatprep.subr.mxu0 0.0
        %894 = vmatpush1.msra.mxu0 0.0
        %895 = vmatprep.subr.mxu0 0.0
        %896 = vmatpush1.msra.mxu0 0.0
        %897 = vmatprep.subr.mxu0 0.0
        %898 = vmatpush1.msra.mxu0 0.0
        %899 = vmatprep.subr.mxu0 0.0
        %900 = vmatpush1.msra.mxu0 0.0
        %901 = vmatprep.mubr.f32.mxu0 0.0
        %902 = vmatmul.mubr.f32.gmra.mrb[0].mxu0 %v835
        %v903 = vpop.f32.mrb[0].mxu0
        %v904 = vadd.f32 0.0, %v903
        %v905 = vpop.f32.mrb[0].mxu0
        %906 = vdwg.mxu0
        %v907 = vrcp.pop %v829
        %v908 = vmul.f32 %v904, %v907
        %909 = vrot.lane.b32.xlu0 %v576, 120
        %v910 = vpop.permute.xlu0 %909
        %911 = vrot.lane.b32.xlu0 %v579, 120
        %v912 = vpop.permute.xlu0 %911
        %v913 = vsel %vm581, %v910, 0
        %v915 = vsel %vm581, %v912, 0
        %917 = vmatprep.subr.mxu0 0.0
        %918 = vmatpush1.xpose.msra.mxu0 %v915
        %919 = vmatprep.subr.mxu0 0.0
        %920 = vmatpush1.xpose.msra.mxu0 0.0
        %921 = vmatprep.subr.mxu0 0.0
        %922 = vmatpush1.xpose.msra.mxu0 0.0
        %923 = vmatprep.subr.mxu0 0.0
        %924 = vmatpush1.xpose.msra.mxu0 0.0
        %925 = vmatprep.subr.mxu0 0.0
        %926 = vmatpush1.xpose.msra.mxu0 0.0
        %927 = vmatprep.subr.mxu0 0.0
        %928 = vmatpush1.xpose.msra.mxu0 0.0
        %929 = vmatprep.subr.mxu0 0.0
        %930 = vmatpush1.xpose.msra.mxu0 0.0
        %931 = vmatprep.subr.mxu0 0.0
        %932 = vmatpush1.xpose.msra.mxu0 0.0
        %933 = vmatprep.subr.mxu0 0.0
        %934 = vmatpush1.xpose.msra.mxu0 0.0
        %935 = vmatprep.subr.mxu0 0.0
        %936 = vmatpush1.xpose.msra.mxu0 0.0
        %937 = vmatprep.subr.mxu0 0.0
        %938 = vmatpush1.xpose.msra.mxu0 0.0
        %939 = vmatprep.subr.mxu0 0.0
        %940 = vmatpush1.xpose.msra.mxu0 0.0
        %941 = vmatprep.subr.mxu0 0.0
        %942 = vmatpush1.xpose.msra.mxu0 0.0
        %943 = vmatprep.subr.mxu0 0.0
        %944 = vmatpush1.xpose.msra.mxu0 0.0
        %945 = vmatprep.subr.mxu0 0.0
        %946 = vmatpush1.xpose.msra.mxu0 0.0
        %947 = vmatprep.subr.mxu0 0.0
        %948 = vmatpush1.xpose.msra.mxu0 0.0
        %949 = vmatprep.subr.mxu0 0.0
        %950 = vmatpush1.xpose.msra.mxu0 0.0
        %951 = vmatprep.subr.mxu0 0.0
        %952 = vmatpush1.xpose.msra.mxu0 0.0
        %953 = vmatprep.subr.mxu0 0.0
        %954 = vmatpush1.xpose.msra.mxu0 0.0
        %955 = vmatprep.subr.mxu0 0.0
        %956 = vmatpush1.xpose.msra.mxu0 0.0
        %957 = vmatprep.subr.mxu0 0.0
        %958 = vmatpush1.xpose.msra.mxu0 0.0
        %959 = vmatprep.subr.mxu0 0.0
        %960 = vmatpush1.xpose.msra.mxu0 0.0
        %961 = vmatprep.subr.mxu0 0.0
        %962 = vmatpush1.xpose.msra.mxu0 0.0
        %963 = vmatprep.subr.mxu0 0.0
        %964 = vmatpush1.xpose.msra.mxu0 0.0
        %965 = vmatprep.subr.mxu0 0.0
        %966 = vmatpush1.xpose.msra.mxu0 0.0
        %967 = vmatprep.subr.mxu0 0.0
        %968 = vmatpush1.xpose.msra.mxu0 0.0
        %969 = vmatprep.subr.mxu0 0.0
        %970 = vmatpush1.xpose.msra.mxu0 0.0
        %971 = vmatprep.subr.mxu0 0.0
        %972 = vmatpush1.xpose.msra.mxu0 0.0
        %973 = vmatprep.subr.mxu0 0.0
        %974 = vmatpush1.xpose.msra.mxu0 0.0
        %975 = vmatprep.subr.mxu0 0.0
        %976 = vmatpush1.xpose.msra.mxu0 0.0
        %977 = vmatprep.subr.mxu0 0.0
        %978 = vmatpush1.xpose.msra.mxu0 0.0
        %979 = vmatprep.subr.mxu0 0.0
        %980 = vmatpush1.xpose.msra.mxu0 0.0
        %981 = vmatprep.mubr.f32.mxu0 0.0
        %982 = vmatmul.mubr.f32.gmra.mrb[0].mxu0 %v913
        %v983 = vpop.f32.mrb[0].mxu0
        %v984 = vadd.f32 0.0, %v983
        %v985 = vpop.f32.mrb[0].mxu0
        %986 = vdwg.mxu0
        %v987 = vsel %vm658, %v984, -inf
        %988 = vmax.xlane.f32.xlu0 %v987
        %v989 = vpop.xlane.xlu0 %988
        %v990 = vsub.f32 %v984, %v989
        %v991 = vmul.f32 %v990, 1.442695
        %v992 = vpow.pop %v991
        %v993 = vsel %vm658, %v992, 0.0
        %994 = vadd.xlane.f32.xlu0 %v993
        %v995 = vpop.xlane.xlu0 %994
        %996 = vrot.lane.b32.xlu0 %v580, 120
        %v997 = vpop.permute.xlu0 %996
        %v1000 = vsel %vm658, %v992, 0
        %1002 = vmatprep.subr.mxu0 0.0
        %1003 = vmatpush1.msra.mxu0 %v997
        %1004 = vmatprep.subr.mxu0 0.0
        %1005 = vmatpush1.msra.mxu0 0.0
        %1006 = vmatprep.subr.mxu0 0.0
        %1007 = vmatpush1.msra.mxu0 0.0
        %1008 = vmatprep.subr.mxu0 0.0
        %1009 = vmatpush1.msra.mxu0 0.0
        %1010 = vmatprep.subr.mxu0 0.0
        %1011 = vmatpush1.msra.mxu0 0.0
        %1012 = vmatprep.subr.mxu0 0.0
        %1013 = vmatpush1.msra.mxu0 0.0
        %1014 = vmatprep.subr.mxu0 0.0
        %1015 = vmatpush1.msra.mxu0 0.0
        %1016 = vmatprep.subr.mxu0 0.0
        %1017 = vmatpush1.msra.mxu0 0.0
        %1018 = vmatprep.subr.mxu0 0.0
        %1019 = vmatpush1.msra.mxu0 0.0
        %1020 = vmatprep.subr.mxu0 0.0
        %1021 = vmatpush1.msra.mxu0 0.0
        %1022 = vmatprep.subr.mxu0 0.0
        %1023 = vmatpush1.msra.mxu0 0.0
        %1024 = vmatprep.subr.mxu0 0.0
        %1025 = vmatpush1.msra.mxu0 0.0
        %1026 = vmatprep.subr.mxu0 0.0
        %1027 = vmatpush1.msra.mxu0 0.0
        %1028 = vmatprep.subr.mxu0 0.0
        %1029 = vmatpush1.msra.mxu0 0.0
        %1030 = vmatprep.subr.mxu0 0.0
        %1031 = vmatpush1.msra.mxu0 0.0
        %1032 = vmatprep.subr.mxu0 0.0
        %1033 = vmatpush1.msra.mxu0 0.0
        %1034 = vmatprep.subr.mxu0 0.0
        %1035 = vmatpush1.msra.mxu0 0.0
        %1036 = vmatprep.subr.mxu0 0.0
        %1037 = vmatpush1.msra.mxu0 0.0
        %1038 = vmatprep.subr.mxu0 0.0
        %1039 = vmatpush1.msra.mxu0 0.0
        %1040 = vmatprep.subr.mxu0 0.0
        %1041 = vmatpush1.msra.mxu0 0.0
        %1042 = vmatprep.subr.mxu0 0.0
        %1043 = vmatpush1.msra.mxu0 0.0
        %1044 = vmatprep.subr.mxu0 0.0
        %1045 = vmatpush1.msra.mxu0 0.0
        %1046 = vmatprep.subr.mxu0 0.0
        %1047 = vmatpush1.msra.mxu0 0.0
        %1048 = vmatprep.subr.mxu0 0.0
        %1049 = vmatpush1.msra.mxu0 0.0
        %1050 = vmatprep.subr.mxu0 0.0
        %1051 = vmatpush1.msra.mxu0 0.0
        %1052 = vmatprep.subr.mxu0 0.0
        %1053 = vmatpush1.msra.mxu0 0.0
        %1054 = vmatprep.subr.mxu0 0.0
        %1055 = vmatpush1.msra.mxu0 0.0
        %1056 = vmatprep.subr.mxu0 0.0
        %1057 = vmatpush1.msra.mxu0 0.0
        %1058 = vmatprep.subr.mxu0 0.0
        %1059 = vmatpush1.msra.mxu0 0.0
        %1060 = vmatprep.subr.mxu0 0.0
        %1061 = vmatpush1.msra.mxu0 0.0
        %1062 = vmatprep.subr.mxu0 0.0
        %1063 = vmatpush1.msra.mxu0 0.0
        %1064 = vmatprep.subr.mxu0 0.0
        %1065 = vmatpush1.msra.mxu0 0.0
        %1066 = vmatprep.mubr.f32.mxu0 0.0
        %1067 = vmatmul.mubr.f32.gmra.mrb[0].mxu0 %v1000
        %v1068 = vpop.f32.mrb[0].mxu0
        %v1069 = vadd.f32 0.0, %v1068
        %v1070 = vpop.f32.mrb[0].mxu0
        %1071 = vdwg.mxu0
        %v1072 = vrcp.pop %v995
        %v1073 = vmul.f32 %v1069, %v1072
        %1074 = vrot.lane.b32.xlu0 %v576, 116
        %v1075 = vpop.permute.xlu0 %1074
        %1076 = vrot.lane.b32.xlu0 %v579, 116
        %v1077 = vpop.permute.xlu0 %1076
        %v1078 = vsel %vm581, %v1075, 0
        %v1080 = vsel %vm581, %v1077, 0
        %1082 = vmatprep.subr.mxu0 0.0
        %1083 = vmatpush1.xpose.msra.mxu0 %v1080
        %1084 = vmatprep.subr.mxu0 0.0
        %1085 = vmatpush1.xpose.msra.mxu0 0.0
        %1086 = vmatprep.subr.mxu0 0.0
        %1087 = vmatpush1.xpose.msra.mxu0 0.0
        %1088 = vmatprep.subr.mxu0 0.0
        %1089 = vmatpush1.xpose.msra.mxu0 0.0
        %1090 = vmatprep.subr.mxu0 0.0
        %1091 = vmatpush1.xpose.msra.mxu0 0.0
        %1092 = vmatprep.subr.mxu0 0.0
        %1093 = vmatpush1.xpose.msra.mxu0 0.0
        %1094 = vmatprep.subr.mxu0 0.0
        %1095 = vmatpush1.xpose.msra.mxu0 0.0
        %1096 = vmatprep.subr.mxu0 0.0
        %1097 = vmatpush1.xpose.msra.mxu0 0.0
        %1098 = vmatprep.subr.mxu0 0.0
        %1099 = vmatpush1.xpose.msra.mxu0 0.0
        %1100 = vmatprep.subr.mxu0 0.0
        %1101 = vmatpush1.xpose.msra.mxu0 0.0
        %1102 = vmatprep.subr.mxu0 0.0
        %1103 = vmatpush1.xpose.msra.mxu0 0.0
        %1104 = vmatprep.subr.mxu0 0.0
        %1105 = vmatpush1.xpose.msra.mxu0 0.0
        %1106 = vmatprep.subr.mxu0 0.0
        %1107 = vmatpush1.xpose.msra.mxu0 0.0
        %1108 = vmatprep.subr.mxu0 0.0
        %1109 = vmatpush1.xpose.msra.mxu0 0.0
        %1110 = vmatprep.subr.mxu0 0.0
        %1111 = vmatpush1.xpose.msra.mxu0 0.0
        %1112 = vmatprep.subr.mxu0 0.0
        %1113 = vmatpush1.xpose.msra.mxu0 0.0
        %1114 = vmatprep.subr.mxu0 0.0
        %1115 = vmatpush1.xpose.msra.mxu0 0.0
        %1116 = vmatprep.subr.mxu0 0.0
        %1117 = vmatpush1.xpose.msra.mxu0 0.0
        %1118 = vmatprep.subr.mxu0 0.0
        %1119 = vmatpush1.xpose.msra.mxu0 0.0
        %1120 = vmatprep.subr.mxu0 0.0
        %1121 = vmatpush1.xpose.msra.mxu0 0.0
        %1122 = vmatprep.subr.mxu0 0.0
        %1123 = vmatpush1.xpose.msra.mxu0 0.0
        %1124 = vmatprep.subr.mxu0 0.0
        %1125 = vmatpush1.xpose.msra.mxu0 0.0
        %1126 = vmatprep.subr.mxu0 0.0
        %1127 = vmatpush1.xpose.msra.mxu0 0.0
        %1128 = vmatprep.subr.mxu0 0.0
        %1129 = vmatpush1.xpose.msra.mxu0 0.0
        %1130 = vmatprep.subr.mxu0 0.0
        %1131 = vmatpush1.xpose.msra.mxu0 0.0
        %1132 = vmatprep.subr.mxu0 0.0
        %1133 = vmatpush1.xpose.msra.mxu0 0.0
        %1134 = vmatprep.subr.mxu0 0.0
        %1135 = vmatpush1.xpose.msra.mxu0 0.0
        %1136 = vmatprep.subr.mxu0 0.0
        %1137 = vmatpush1.xpose.msra.mxu0 0.0
        %1138 = vmatprep.subr.mxu0 0.0
        %1139 = vmatpush1.xpose.msra.mxu0 0.0
        %1140 = vmatprep.subr.mxu0 0.0
        %1141 = vmatpush1.xpose.msra.mxu0 0.0
        %1142 = vmatprep.subr.mxu0 0.0
        %1143 = vmatpush1.xpose.msra.mxu0 0.0
        %1144 = vmatprep.subr.mxu0 0.0
        %1145 = vmatpush1.xpose.msra.mxu0 0.0
        %1146 = vmatprep.mubr.f32.mxu0 0.0
        %1147 = vmatmul.mubr.f32.gmra.mrb[0].mxu0 %v1078
        %v1148 = vpop.f32.mrb[0].mxu0
        %v1149 = vadd.f32 0.0, %v1148
        %v1150 = vpop.f32.mrb[0].mxu0
        %1151 = vdwg.mxu0
        %v1152 = vsel %vm658, %v1149, -inf
        %1153 = vmax.xlane.f32.xlu0 %v1152
        %v1154 = vpop.xlane.xlu0 %1153
        %v1155 = vsub.f32 %v1149, %v1154
        %v1156 = vmul.f32 %v1155, 1.442695
        %v1157 = vpow.pop %v1156
        %v1158 = vsel %vm658, %v1157, 0.0
        %1159 = vadd.xlane.f32.xlu0 %v1158
        %v1160 = vpop.xlane.xlu0 %1159
        %1161 = vrot.lane.b32.xlu0 %v580, 116
        %v1162 = vpop.permute.xlu0 %1161
        %v1165 = vsel %vm658, %v1157, 0
        %1167 = vmatprep.subr.mxu0 0.0
        %1168 = vmatpush1.msra.mxu0 %v1162
        %1169 = vmatprep.subr.mxu0 0.0
        %1170 = vmatpush1.msra.mxu0 0.0
        %1171 = vmatprep.subr.mxu0 0.0
        %1172 = vmatpush1.msra.mxu0 0.0
        %1173 = vmatprep.subr.mxu0 0.0
        %1174 = vmatpush1.msra.mxu0 0.0
        %1175 = vmatprep.subr.mxu0 0.0
        %1176 = vmatpush1.msra.mxu0 0.0
        %1177 = vmatprep.subr.mxu0 0.0
        %1178 = vmatpush1.msra.mxu0 0.0
        %1179 = vmatprep.subr.mxu0 0.0
        %1180 = vmatpush1.msra.mxu0 0.0
        %1181 = vmatprep.subr.mxu0 0.0
        %1182 = vmatpush1.msra.mxu0 0.0
        %1183 = vmatprep.subr.mxu0 0.0
        %1184 = vmatpush1.msra.mxu0 0.0
        %1185 = vmatprep.subr.mxu0 0.0
        %1186 = vmatpush1.msra.mxu0 0.0
        %1187 = vmatprep.subr.mxu0 0.0
        %1188 = vmatpush1.msra.mxu0 0.0
        %1189 = vmatprep.subr.mxu0 0.0
        %1190 = vmatpush1.msra.mxu0 0.0
        %1191 = vmatprep.subr.mxu0 0.0
        %1192 = vmatpush1.msra.mxu0 0.0
        %1193 = vmatprep.subr.mxu0 0.0
        %1194 = vmatpush1.msra.mxu0 0.0
        %1195 = vmatprep.subr.mxu0 0.0
        %1196 = vmatpush1.msra.mxu0 0.0
        %1197 = vmatprep.subr.mxu0 0.0
        %1198 = vmatpush1.msra.mxu0 0.0
        %1199 = vmatprep.subr.mxu0 0.0
        %1200 = vmatpush1.msra.mxu0 0.0
        %1201 = vmatprep.subr.mxu0 0.0
        %1202 = vmatpush1.msra.mxu0 0.0
        %1203 = vmatprep.subr.mxu0 0.0
        %1204 = vmatpush1.msra.mxu0 0.0
        %1205 = vmatprep.subr.mxu0 0.0
        %1206 = vmatpush1.msra.mxu0 0.0
        %1207 = vmatprep.subr.mxu0 0.0
        %1208 = vmatpush1.msra.mxu0 0.0
        %1209 = vmatprep.subr.mxu0 0.0
        %1210 = vmatpush1.msra.mxu0 0.0
        %1211 = vmatprep.subr.mxu0 0.0
        %1212 = vmatpush1.msra.mxu0 0.0
        %1213 = vmatprep.subr.mxu0 0.0
        %1214 = vmatpush1.msra.mxu0 0.0
        %1215 = vmatprep.subr.mxu0 0.0
        %1216 = vmatpush1.msra.mxu0 0.0
        %1217 = vmatprep.subr.mxu0 0.0
        %1218 = vmatpush1.msra.mxu0 0.0
        %1219 = vmatprep.subr.mxu0 0.0
        %1220 = vmatpush1.msra.mxu0 0.0
        %1221 = vmatprep.subr.mxu0 0.0
        %1222 = vmatpush1.msra.mxu0 0.0
        %1223 = vmatprep.subr.mxu0 0.0
        %1224 = vmatpush1.msra.mxu0 0.0
        %1225 = vmatprep.subr.mxu0 0.0
        %1226 = vmatpush1.msra.mxu0 0.0
        %1227 = vmatprep.subr.mxu0 0.0
        %1228 = vmatpush1.msra.mxu0 0.0
        %1229 = vmatprep.subr.mxu0 0.0
        %1230 = vmatpush1.msra.mxu0 0.0
        %1231 = vmatprep.mubr.f32.mxu0 0.0
        %1232 = vmatmul.mubr.f32.gmra.mrb[0].mxu0 %v1165
        %v1233 = vpop.f32.mrb[0].mxu0
        %v1234 = vadd.f32 0.0, %v1233
        %v1235 = vpop.f32.mrb[0].mxu0
        %1236 = vdwg.mxu0
        %v1237 = vrcp.pop %v1160
        %v1238 = vmul.f32 %v1234, %v1237
        %1239 = vrot.lane.b32.xlu0 %v576, 112
        %v1240 = vpop.permute.xlu0 %1239
        %1241 = vrot.lane.b32.xlu0 %v579, 112
        %v1242 = vpop.permute.xlu0 %1241
        %v1243 = vsel %vm581, %v1240, 0
        %v1245 = vsel %vm581, %v1242, 0
        %1247 = vmatprep.subr.mxu0 0.0
        %1248 = vmatpush1.xpose.msra.mxu0 %v1245
        %1249 = vmatprep.subr.mxu0 0.0
        %1250 = vmatpush1.xpose.msra.mxu0 0.0
        %1251 = vmatprep.subr.mxu0 0.0
        %1252 = vmatpush1.xpose.msra.mxu0 0.0
        %1253 = vmatprep.subr.mxu0 0.0
        %1254 = vmatpush1.xpose.msra.mxu0 0.0
        %1255 = vmatprep.subr.mxu0 0.0
        %1256 = vmatpush1.xpose.msra.mxu0 0.0
        %1257 = vmatprep.subr.mxu0 0.0
        %1258 = vmatpush1.xpose.msra.mxu0 0.0
        %1259 = vmatprep.subr.mxu0 0.0
        %1260 = vmatpush1.xpose.msra.mxu0 0.0
        %1261 = vmatprep.subr.mxu0 0.0
        %1262 = vmatpush1.xpose.msra.mxu0 0.0
        %1263 = vmatprep.subr.mxu0 0.0
        %1264 = vmatpush1.xpose.msra.mxu0 0.0
        %1265 = vmatprep.subr.mxu0 0.0
        %1266 = vmatpush1.xpose.msra.mxu0 0.0
        %1267 = vmatprep.subr.mxu0 0.0
        %1268 = vmatpush1.xpose.msra.mxu0 0.0
        %1269 = vmatprep.subr.mxu0 0.0
        %1270 = vmatpush1.xpose.msra.mxu0 0.0
        %1271 = vmatprep.subr.mxu0 0.0
        %1272 = vmatpush1.xpose.msra.mxu0 0.0
        %1273 = vmatprep.subr.mxu0 0.0
        %1274 = vmatpush1.xpose.msra.mxu0 0.0
        %1275 = vmatprep.subr.mxu0 0.0
        %1276 = vmatpush1.xpose.msra.mxu0 0.0
        %1277 = vmatprep.subr.mxu0 0.0
        %1278 = vmatpush1.xpose.msra.mxu0 0.0
        %1279 = vmatprep.subr.mxu0 0.0
        %1280 = vmatpush1.xpose.msra.mxu0 0.0
        %1281 = vmatprep.subr.mxu0 0.0
        %1282 = vmatpush1.xpose.msra.mxu0 0.0
        %1283 = vmatprep.subr.mxu0 0.0
        %1284 = vmatpush1.xpose.msra.mxu0 0.0
        %1285 = vmatprep.subr.mxu0 0.0
        %1286 = vmatpush1.xpose.msra.mxu0 0.0
        %1287 = vmatprep.subr.mxu0 0.0
        %1288 = vmatpush1.xpose.msra.mxu0 0.0
        %1289 = vmatprep.subr.mxu0 0.0
        %1290 = vmatpush1.xpose.msra.mxu0 0.0
        %1291 = vmatprep.subr.mxu0 0.0
        %1292 = vmatpush1.xpose.msra.mxu0 0.0
        %1293 = vmatprep.subr.mxu0 0.0
        %1294 = vmatpush1.xpose.msra.mxu0 0.0
        %1295 = vmatprep.subr.mxu0 0.0
        %1296 = vmatpush1.xpose.msra.mxu0 0.0
        %1297 = vmatprep.subr.mxu0 0.0
        %1298 = vmatpush1.xpose.msra.mxu0 0.0
        %1299 = vmatprep.subr.mxu0 0.0
        %1300 = vmatpush1.xpose.msra.mxu0 0.0
        %1301 = vmatprep.subr.mxu0 0.0
        %1302 = vmatpush1.xpose.msra.mxu0 0.0
        %1303 = vmatprep.subr.mxu0 0.0
        %1304 = vmatpush1.xpose.msra.mxu0 0.0
        %1305 = vmatprep.subr.mxu0 0.0
        %1306 = vmatpush1.xpose.msra.mxu0 0.0
        %1307 = vmatprep.subr.mxu0 0.0
        %1308 = vmatpush1.xpose.msra.mxu0 0.0
        %1309 = vmatprep.subr.mxu0 0.0
        %1310 = vmatpush1.xpose.msra.mxu0 0.0
        %1311 = vmatprep.mubr.f32.mxu0 0.0
        %1312 = vmatmul.mubr.f32.gmra.mrb[0].mxu0 %v1243
        %v1313 = vpop.f32.mrb[0].mxu0
        %v1314 = vadd.f32 0.0, %v1313
        %v1315 = vpop.f32.mrb[0].mxu0
        %1316 = vdwg.mxu0
        %v1317 = vsel %vm658, %v1314, -inf
        %1318 = vmax.xlane.f32.xlu0 %v1317
        %v1319 = vpop.xlane.xlu0 %1318
        %v1320 = vsub.f32 %v1314, %v1319
        %v1321 = vmul.f32 %v1320, 1.442695
        %v1322 = vpow.pop %v1321
        %v1323 = vsel %vm658, %v1322, 0.0
        %1324 = vadd.xlane.f32.xlu0 %v1323
        %v1325 = vpop.xlane.xlu0 %1324
        %1326 = vrot.lane.b32.xlu0 %v580, 112
        %v1327 = vpop.permute.xlu0 %1326
        %v1330 = vsel %vm658, %v1322, 0
        %1332 = vmatprep.subr.mxu0 0.0
        %1333 = vmatpush1.msra.mxu0 %v1327
        %1334 = vmatprep.subr.mxu0 0.0
        %1335 = vmatpush1.msra.mxu0 0.0
        %1336 = vmatprep.subr.mxu0 0.0
        %1337 = vmatpush1.msra.mxu0 0.0
        %1338 = vmatprep.subr.mxu0 0.0
        %1339 = vmatpush1.msra.mxu0 0.0
        %1340 = vmatprep.subr.mxu0 0.0
        %1341 = vmatpush1.msra.mxu0 0.0
        %1342 = vmatprep.subr.mxu0 0.0
        %1343 = vmatpush1.msra.mxu0 0.0
        %1344 = vmatprep.subr.mxu0 0.0
        %1345 = vmatpush1.msra.mxu0 0.0
        %1346 = vmatprep.subr.mxu0 0.0
        %1347 = vmatpush1.msra.mxu0 0.0
        %1348 = vmatprep.subr.mxu0 0.0
        %1349 = vmatpush1.msra.mxu0 0.0
        %1350 = vmatprep.subr.mxu0 0.0
        %1351 = vmatpush1.msra.mxu0 0.0
        %1352 = vmatprep.subr.mxu0 0.0
        %1353 = vmatpush1.msra.mxu0 0.0
        %1354 = vmatprep.subr.mxu0 0.0
        %1355 = vmatpush1.msra.mxu0 0.0
        %1356 = vmatprep.subr.mxu0 0.0
        %1357 = vmatpush1.msra.mxu0 0.0
        %1358 = vmatprep.subr.mxu0 0.0
        %1359 = vmatpush1.msra.mxu0 0.0
        %1360 = vmatprep.subr.mxu0 0.0
        %1361 = vmatpush1.msra.mxu0 0.0
        %1362 = vmatprep.subr.mxu0 0.0
        %1363 = vmatpush1.msra.mxu0 0.0
        %1364 = vmatprep.subr.mxu0 0.0
        %1365 = vmatpush1.msra.mxu0 0.0
        %1366 = vmatprep.subr.mxu0 0.0
        %1367 = vmatpush1.msra.mxu0 0.0
        %1368 = vmatprep.subr.mxu0 0.0
        %1369 = vmatpush1.msra.mxu0 0.0
        %1370 = vmatprep.subr.mxu0 0.0
        %1371 = vmatpush1.msra.mxu0 0.0
        %1372 = vmatprep.subr.mxu0 0.0
        %1373 = vmatpush1.msra.mxu0 0.0
        %1374 = vmatprep.subr.mxu0 0.0
        %1375 = vmatpush1.msra.mxu0 0.0
        %1376 = vmatprep.subr.mxu0 0.0
        %1377 = vmatpush1.msra.mxu0 0.0
        %1378 = vmatprep.subr.mxu0 0.0
        %1379 = vmatpush1.msra.mxu0 0.0
        %1380 = vmatprep.subr.mxu0 0.0
        %1381 = vmatpush1.msra.mxu0 0.0
        %1382 = vmatprep.subr.mxu0 0.0
        %1383 = vmatpush1.msra.mxu0 0.0
        %1384 = vmatprep.subr.mxu0 0.0
        %1385 = vmatpush1.msra.mxu0 0.0
        %1386 = vmatprep.subr.mxu0 0.0
        %1387 = vmatpush1.msra.mxu0 0.0
        %1388 = vmatprep.subr.mxu0 0.0
        %1389 = vmatpush1.msra.mxu0 0.0
        %1390 = vmatprep.subr.mxu0 0.0
        %1391 = vmatpush1.msra.mxu0 0.0
        %1392 = vmatprep.subr.mxu0 0.0
        %1393 = vmatpush1.msra.mxu0 0.0
        %1394 = vmatprep.subr.mxu0 0.0
        %1395 = vmatpush1.msra.mxu0 0.0
        %1396 = vmatprep.mubr.f32.mxu0 0.0
        %1397 = vmatmul.mubr.f32.gmra.mrb[0].mxu0 %v1330
        %v1398 = vpop.f32.mrb[0].mxu0
        %v1399 = vadd.f32 0.0, %v1398
        %v1400 = vpop.f32.mrb[0].mxu0
        %1401 = vdwg.mxu0
        %v1402 = vrcp.pop %v1325
        %v1403 = vmul.f32 %v1399, %v1402
        %1404 = vrot.lane.b32.xlu0 %v576, 108
        %v1405 = vpop.permute.xlu0 %1404
        %1406 = vrot.lane.b32.xlu0 %v579, 108
        %v1407 = vpop.permute.xlu0 %1406
        %v1408 = vsel %vm581, %v1405, 0
        %v1410 = vsel %vm581, %v1407, 0
        %1412 = vmatprep.subr.mxu0 0.0
        %1413 = vmatpush1.xpose.msra.mxu0 %v1410
        %1414 = vmatprep.subr.mxu0 0.0
        %1415 = vmatpush1.xpose.msra.mxu0 0.0
        %1416 = vmatprep.subr.mxu0 0.0
        %1417 = vmatpush1.xpose.msra.mxu0 0.0
        %1418 = vmatprep.subr.mxu0 0.0
        %1419 = vmatpush1.xpose.msra.mxu0 0.0
        %1420 = vmatprep.subr.mxu0 0.0
        %1421 = vmatpush1.xpose.msra.mxu0 0.0
        %1422 = vmatprep.subr.mxu0 0.0
        %1423 = vmatpush1.xpose.msra.mxu0 0.0
        %1424 = vmatprep.subr.mxu0 0.0
        %1425 = vmatpush1.xpose.msra.mxu0 0.0
        %1426 = vmatprep.subr.mxu0 0.0
        %1427 = vmatpush1.xpose.msra.mxu0 0.0
        %1428 = vmatprep.subr.mxu0 0.0
        %1429 = vmatpush1.xpose.msra.mxu0 0.0
        %1430 = vmatprep.subr.mxu0 0.0
        %1431 = vmatpush1.xpose.msra.mxu0 0.0
        %1432 = vmatprep.subr.mxu0 0.0
        %1433 = vmatpush1.xpose.msra.mxu0 0.0
        %1434 = vmatprep.subr.mxu0 0.0
        %1435 = vmatpush1.xpose.msra.mxu0 0.0
        %1436 = vmatprep.subr.mxu0 0.0
        %1437 = vmatpush1.xpose.msra.mxu0 0.0
        %1438 = vmatprep.subr.mxu0 0.0
        %1439 = vmatpush1.xpose.msra.mxu0 0.0
        %1440 = vmatprep.subr.mxu0 0.0
        %1441 = vmatpush1.xpose.msra.mxu0 0.0
        %1442 = vmatprep.subr.mxu0 0.0
        %1443 = vmatpush1.xpose.msra.mxu0 0.0
        %1444 = vmatprep.subr.mxu0 0.0
        %1445 = vmatpush1.xpose.msra.mxu0 0.0
        %1446 = vmatprep.subr.mxu0 0.0
        %1447 = vmatpush1.xpose.msra.mxu0 0.0
        %1448 = vmatprep.subr.mxu0 0.0
        %1449 = vmatpush1.xpose.msra.mxu0 0.0
        %1450 = vmatprep.subr.mxu0 0.0
        %1451 = vmatpush1.xpose.msra.mxu0 0.0
        %1452 = vmatprep.subr.mxu0 0.0
        %1453 = vmatpush1.xpose.msra.mxu0 0.0
        %1454 = vmatprep.subr.mxu0 0.0
        %1455 = vmatpush1.xpose.msra.mxu0 0.0
        %1456 = vmatprep.subr.mxu0 0.0
        %1457 = vmatpush1.xpose.msra.mxu0 0.0
        %1458 = vmatprep.subr.mxu0 0.0
        %1459 = vmatpush1.xpose.msra.mxu0 0.0
        %1460 = vmatprep.subr.mxu0 0.0
        %1461 = vmatpush1.xpose.msra.mxu0 0.0
        %1462 = vmatprep.subr.mxu0 0.0
        %1463 = vmatpush1.xpose.msra.mxu0 0.0
        %1464 = vmatprep.subr.mxu0 0.0
        %1465 = vmatpush1.xpose.msra.mxu0 0.0
        %1466 = vmatprep.subr.mxu0 0.0
        %1467 = vmatpush1.xpose.msra.mxu0 0.0
        %1468 = vmatprep.subr.mxu0 0.0
        %1469 = vmatpush1.xpose.msra.mxu0 0.0
        %1470 = vmatprep.subr.mxu0 0.0
        %1471 = vmatpush1.xpose.msra.mxu0 0.0
        %1472 = vmatprep.subr.mxu0 0.0
        %1473 = vmatpush1.xpose.msra.mxu0 0.0
        %1474 = vmatprep.subr.mxu0 0.0
        %1475 = vmatpush1.xpose.msra.mxu0 0.0
        %1476 = vmatprep.mubr.f32.mxu0 0.0
        %1477 = vmatmul.mubr.f32.gmra.mrb[0].mxu0 %v1408
        %v1478 = vpop.f32.mrb[0].mxu0
        %v1479 = vadd.f32 0.0, %v1478
        %v1480 = vpop.f32.mrb[0].mxu0
        %1481 = vdwg.mxu0
        %v1482 = vsel %vm658, %v1479, -inf
        %1483 = vmax.xlane.f32.xlu0 %v1482
        %v1484 = vpop.xlane.xlu0 %1483
        %v1485 = vsub.f32 %v1479, %v1484
        %v1486 = vmul.f32 %v1485, 1.442695
        %v1487 = vpow.pop %v1486
        %v1488 = vsel %vm658, %v1487, 0.0
        %1489 = vadd.xlane.f32.xlu0 %v1488
        %v1490 = vpop.xlane.xlu0 %1489
        %1491 = vrot.lane.b32.xlu0 %v580, 108
        %v1492 = vpop.permute.xlu0 %1491
        %v1495 = vsel %vm658, %v1487, 0
        %1497 = vmatprep.subr.mxu0 0.0
        %1498 = vmatpush1.msra.mxu0 %v1492
        %1499 = vmatprep.subr.mxu0 0.0
        %1500 = vmatpush1.msra.mxu0 0.0
        %1501 = vmatprep.subr.mxu0 0.0
        %1502 = vmatpush1.msra.mxu0 0.0
        %1503 = vmatprep.subr.mxu0 0.0
        %1504 = vmatpush1.msra.mxu0 0.0
        %1505 = vmatprep.subr.mxu0 0.0
        %1506 = vmatpush1.msra.mxu0 0.0
        %1507 = vmatprep.subr.mxu0 0.0
        %1508 = vmatpush1.msra.mxu0 0.0
        %1509 = vmatprep.subr.mxu0 0.0
        %1510 = vmatpush1.msra.mxu0 0.0
        %1511 = vmatprep.subr.mxu0 0.0
        %1512 = vmatpush1.msra.mxu0 0.0
        %1513 = vmatprep.subr.mxu0 0.0
        %1514 = vmatpush1.msra.mxu0 0.0
        %1515 = vmatprep.subr.mxu0 0.0
        %1516 = vmatpush1.msra.mxu0 0.0
        %1517 = vmatprep.subr.mxu0 0.0
        %1518 = vmatpush1.msra.mxu0 0.0
        %1519 = vmatprep.subr.mxu0 0.0
        %1520 = vmatpush1.msra.mxu0 0.0
        %1521 = vmatprep.subr.mxu0 0.0
        %1522 = vmatpush1.msra.mxu0 0.0
        %1523 = vmatprep.subr.mxu0 0.0
        %1524 = vmatpush1.msra.mxu0 0.0
        %1525 = vmatprep.subr.mxu0 0.0
        %1526 = vmatpush1.msra.mxu0 0.0
        %1527 = vmatprep.subr.mxu0 0.0
        %1528 = vmatpush1.msra.mxu0 0.0
        %1529 = vmatprep.subr.mxu0 0.0
        %1530 = vmatpush1.msra.mxu0 0.0
        %1531 = vmatprep.subr.mxu0 0.0
        %1532 = vmatpush1.msra.mxu0 0.0
        %1533 = vmatprep.subr.mxu0 0.0
        %1534 = vmatpush1.msra.mxu0 0.0
        %1535 = vmatprep.subr.mxu0 0.0
        %1536 = vmatpush1.msra.mxu0 0.0
        %1537 = vmatprep.subr.mxu0 0.0
        %1538 = vmatpush1.msra.mxu0 0.0
        %1539 = vmatprep.subr.mxu0 0.0
        %1540 = vmatpush1.msra.mxu0 0.0
        %1541 = vmatprep.subr.mxu0 0.0
        %1542 = vmatpush1.msra.mxu0 0.0
        %1543 = vmatprep.subr.mxu0 0.0
        %1544 = vmatpush1.msra.mxu0 0.0
        %1545 = vmatprep.subr.mxu0 0.0
        %1546 = vmatpush1.msra.mxu0 0.0
        %1547 = vmatprep.subr.mxu0 0.0
        %1548 = vmatpush1.msra.mxu0 0.0
        %1549 = vmatprep.subr.mxu0 0.0
        %1550 = vmatpush1.msra.mxu0 0.0
        %1551 = vmatprep.subr.mxu0 0.0
        %1552 = vmatpush1.msra.mxu0 0.0
        %1553 = vmatprep.subr.mxu0 0.0
        %1554 = vmatpush1.msra.mxu0 0.0
        %1555 = vmatprep.subr.mxu0 0.0
        %1556 = vmatpush1.msra.mxu0 0.0
        %1557 = vmatprep.subr.mxu0 0.0
        %1558 = vmatpush1.msra.mxu0 0.0
        %1559 = vmatprep.subr.mxu0 0.0
        %1560 = vmatpush1.msra.mxu0 0.0
        %1561 = vmatprep.mubr.f32.mxu0 0.0
        %1562 = vmatmul.mubr.f32.gmra.mrb[0].mxu0 %v1495
        %v1563 = vpop.f32.mrb[0].mxu0
        %v1564 = vadd.f32 0.0, %v1563
        %v1565 = vpop.f32.mrb[0].mxu0
        %1566 = vdwg.mxu0
        %v1567 = vrcp.pop %v1490
        %v1568 = vmul.f32 %v1564, %v1567
        %1569 = vrot.lane.b32.xlu0 %v576, 104
        %v1570 = vpop.permute.xlu0 %1569
        %1571 = vrot.lane.b32.xlu0 %v579, 104
        %v1572 = vpop.permute.xlu0 %1571
        %v1573 = vsel %vm581, %v1570, 0
        %v1575 = vsel %vm581, %v1572, 0
        %1577 = vmatprep.subr.mxu0 0.0
        %1578 = vmatpush1.xpose.msra.mxu0 %v1575
        %1579 = vmatprep.subr.mxu0 0.0
        %1580 = vmatpush1.xpose.msra.mxu0 0.0
        %1581 = vmatprep.subr.mxu0 0.0
        %1582 = vmatpush1.xpose.msra.mxu0 0.0
        %1583 = vmatprep.subr.mxu0 0.0
        %1584 = vmatpush1.xpose.msra.mxu0 0.0
        %1585 = vmatprep.subr.mxu0 0.0
        %1586 = vmatpush1.xpose.msra.mxu0 0.0
        %1587 = vmatprep.subr.mxu0 0.0
        %1588 = vmatpush1.xpose.msra.mxu0 0.0
        %1589 = vmatprep.subr.mxu0 0.0
        %1590 = vmatpush1.xpose.msra.mxu0 0.0
        %1591 = vmatprep.subr.mxu0 0.0
        %1592 = vmatpush1.xpose.msra.mxu0 0.0
        %1593 = vmatprep.subr.mxu0 0.0
        %1594 = vmatpush1.xpose.msra.mxu0 0.0
        %1595 = vmatprep.subr.mxu0 0.0
        %1596 = vmatpush1.xpose.msra.mxu0 0.0
        %1597 = vmatprep.subr.mxu0 0.0
        %1598 = vmatpush1.xpose.msra.mxu0 0.0
        %1599 = vmatprep.subr.mxu0 0.0
        %1600 = vmatpush1.xpose.msra.mxu0 0.0
        %1601 = vmatprep.subr.mxu0 0.0
        %1602 = vmatpush1.xpose.msra.mxu0 0.0
        %1603 = vmatprep.subr.mxu0 0.0
        %1604 = vmatpush1.xpose.msra.mxu0 0.0
        %1605 = vmatprep.subr.mxu0 0.0
        %1606 = vmatpush1.xpose.msra.mxu0 0.0
        %1607 = vmatprep.subr.mxu0 0.0
        %1608 = vmatpush1.xpose.msra.mxu0 0.0
        %1609 = vmatprep.subr.mxu0 0.0
        %1610 = vmatpush1.xpose.msra.mxu0 0.0
        %1611 = vmatprep.subr.mxu0 0.0
        %1612 = vmatpush1.xpose.msra.mxu0 0.0
        %1613 = vmatprep.subr.mxu0 0.0
        %1614 = vmatpush1.xpose.msra.mxu0 0.0
        %1615 = vmatprep.subr.mxu0 0.0
        %1616 = vmatpush1.xpose.msra.mxu0 0.0
        %1617 = vmatprep.subr.mxu0 0.0
        %1618 = vmatpush1.xpose.msra.mxu0 0.0
        %1619 = vmatprep.subr.mxu0 0.0
        %1620 = vmatpush1.xpose.msra.mxu0 0.0
        %1621 = vmatprep.subr.mxu0 0.0
        %1622 = vmatpush1.xpose.msra.mxu0 0.0
        %1623 = vmatprep.subr.mxu0 0.0
        %1624 = vmatpush1.xpose.msra.mxu0 0.0
        %1625 = vmatprep.subr.mxu0 0.0
        %1626 = vmatpush1.xpose.msra.mxu0 0.0
        %1627 = vmatprep.subr.mxu0 0.0
        %1628 = vmatpush1.xpose.msra.mxu0 0.0
        %1629 = vmatprep.subr.mxu0 0.0
        %1630 = vmatpush1.xpose.msra.mxu0 0.0
        %1631 = vmatprep.subr.mxu0 0.0
        %1632 = vmatpush1.xpose.msra.mxu0 0.0
        %1633 = vmatprep.subr.mxu0 0.0
        %1634 = vmatpush1.xpose.msra.mxu0 0.0
        %1635 = vmatprep.subr.mxu0 0.0
        %1636 = vmatpush1.xpose.msra.mxu0 0.0
        %1637 = vmatprep.subr.mxu0 0.0
        %1638 = vmatpush1.xpose.msra.mxu0 0.0
        %1639 = vmatprep.subr.mxu0 0.0
        %1640 = vmatpush1.xpose.msra.mxu0 0.0
        %1641 = vmatprep.mubr.f32.mxu0 0.0
        %1642 = vmatmul.mubr.f32.gmra.mrb[0].mxu0 %v1573
        %v1643 = vpop.f32.mrb[0].mxu0
        %v1644 = vadd.f32 0.0, %v1643
        %v1645 = vpop.f32.mrb[0].mxu0
        %1646 = vdwg.mxu0
        %v1647 = vsel %vm658, %v1644, -inf
        %1648 = vmax.xlane.f32.xlu0 %v1647
        %v1649 = vpop.xlane.xlu0 %1648
        %v1650 = vsub.f32 %v1644, %v1649
        %v1651 = vmul.f32 %v1650, 1.442695
        %v1652 = vpow.pop %v1651
        %v1653 = vsel %vm658, %v1652, 0.0
        %1654 = vadd.xlane.f32.xlu0 %v1653
        %v1655 = vpop.xlane.xlu0 %1654
        %1656 = vrot.lane.b32.xlu0 %v580, 104
        %v1657 = vpop.permute.xlu0 %1656
        %v1660 = vsel %vm658, %v1652, 0
        %1662 = vmatprep.subr.mxu0 0.0
        %1663 = vmatpush1.msra.mxu0 %v1657
        %1664 = vmatprep.subr.mxu0 0.0
        %1665 = vmatpush1.msra.mxu0 0.0
        %1666 = vmatprep.subr.mxu0 0.0
        %1667 = vmatpush1.msra.mxu0 0.0
        %1668 = vmatprep.subr.mxu0 0.0
        %1669 = vmatpush1.msra.mxu0 0.0
        %1670 = vmatprep.subr.mxu0 0.0
        %1671 = vmatpush1.msra.mxu0 0.0
        %1672 = vmatprep.subr.mxu0 0.0
        %1673 = vmatpush1.msra.mxu0 0.0
        %1674 = vmatprep.subr.mxu0 0.0
        %1675 = vmatpush1.msra.mxu0 0.0
        %1676 = vmatprep.subr.mxu0 0.0
        %1677 = vmatpush1.msra.mxu0 0.0
        %1678 = vmatprep.subr.mxu0 0.0
        %1679 = vmatpush1.msra.mxu0 0.0
        %1680 = vmatprep.subr.mxu0 0.0
        %1681 = vmatpush1.msra.mxu0 0.0
        %1682 = vmatprep.subr.mxu0 0.0
        %1683 = vmatpush1.msra.mxu0 0.0
        %1684 = vmatprep.subr.mxu0 0.0
        %1685 = vmatpush1.msra.mxu0 0.0
        %1686 = vmatprep.subr.mxu0 0.0
        %1687 = vmatpush1.msra.mxu0 0.0
        %1688 = vmatprep.subr.mxu0 0.0
        %1689 = vmatpush1.msra.mxu0 0.0
        %1690 = vmatprep.subr.mxu0 0.0
        %1691 = vmatpush1.msra.mxu0 0.0
        %1692 = vmatprep.subr.mxu0 0.0
        %1693 = vmatpush1.msra.mxu0 0.0
        %1694 = vmatprep.subr.mxu0 0.0
        %1695 = vmatpush1.msra.mxu0 0.0
        %1696 = vmatprep.subr.mxu0 0.0
        %1697 = vmatpush1.msra.mxu0 0.0
        %1698 = vmatprep.subr.mxu0 0.0
        %1699 = vmatpush1.msra.mxu0 0.0
        %1700 = vmatprep.subr.mxu0 0.0
        %1701 = vmatpush1.msra.mxu0 0.0
        %1702 = vmatprep.subr.mxu0 0.0
        %1703 = vmatpush1.msra.mxu0 0.0
        %1704 = vmatprep.subr.mxu0 0.0
        %1705 = vmatpush1.msra.mxu0 0.0
        %1706 = vmatprep.subr.mxu0 0.0
        %1707 = vmatpush1.msra.mxu0 0.0
        %1708 = vmatprep.subr.mxu0 0.0
        %1709 = vmatpush1.msra.mxu0 0.0
        %1710 = vmatprep.subr.mxu0 0.0
        %1711 = vmatpush1.msra.mxu0 0.0
        %1712 = vmatprep.subr.mxu0 0.0
        %1713 = vmatpush1.msra.mxu0 0.0
        %1714 = vmatprep.subr.mxu0 0.0
        %1715 = vmatpush1.msra.mxu0 0.0
        %1716 = vmatprep.subr.mxu0 0.0
        %1717 = vmatpush1.msra.mxu0 0.0
        %1718 = vmatprep.subr.mxu0 0.0
        %1719 = vmatpush1.msra.mxu0 0.0
        %1720 = vmatprep.subr.mxu0 0.0
        %1721 = vmatpush1.msra.mxu0 0.0
        %1722 = vmatprep.subr.mxu0 0.0
        %1723 = vmatpush1.msra.mxu0 0.0
        %1724 = vmatprep.subr.mxu0 0.0
        %1725 = vmatpush1.msra.mxu0 0.0
        %1726 = vmatprep.mubr.f32.mxu0 0.0
        %1727 = vmatmul.mubr.f32.gmra.mrb[0].mxu0 %v1660
        %v1728 = vpop.f32.mrb[0].mxu0
        %v1729 = vadd.f32 0.0, %v1728
        %v1730 = vpop.f32.mrb[0].mxu0
        %1731 = vdwg.mxu0
        %v1732 = vrcp.pop %v1655
        %v1733 = vmul.f32 %v1729, %v1732
        %1734 = vrot.lane.b32.xlu0 %v576, 100
        %v1735 = vpop.permute.xlu0 %1734
        %1736 = vrot.lane.b32.xlu0 %v579, 100
        %v1737 = vpop.permute.xlu0 %1736
        %v1738 = vsel %vm581, %v1735, 0
        %v1740 = vsel %vm581, %v1737, 0
        %1742 = vmatprep.subr.mxu0 0.0
        %1743 = vmatpush1.xpose.msra.mxu0 %v1740
        %1744 = vmatprep.subr.mxu0 0.0
        %1745 = vmatpush1.xpose.msra.mxu0 0.0
        %1746 = vmatprep.subr.mxu0 0.0
        %1747 = vmatpush1.xpose.msra.mxu0 0.0
        %1748 = vmatprep.subr.mxu0 0.0
        %1749 = vmatpush1.xpose.msra.mxu0 0.0
        %1750 = vmatprep.subr.mxu0 0.0
        %1751 = vmatpush1.xpose.msra.mxu0 0.0
        %1752 = vmatprep.subr.mxu0 0.0
        %1753 = vmatpush1.xpose.msra.mxu0 0.0
        %1754 = vmatprep.subr.mxu0 0.0
        %1755 = vmatpush1.xpose.msra.mxu0 0.0
        %1756 = vmatprep.subr.mxu0 0.0
        %1757 = vmatpush1.xpose.msra.mxu0 0.0
        %1758 = vmatprep.subr.mxu0 0.0
        %1759 = vmatpush1.xpose.msra.mxu0 0.0
        %1760 = vmatprep.subr.mxu0 0.0
        %1761 = vmatpush1.xpose.msra.mxu0 0.0
        %1762 = vmatprep.subr.mxu0 0.0
        %1763 = vmatpush1.xpose.msra.mxu0 0.0
        %1764 = vmatprep.subr.mxu0 0.0
        %1765 = vmatpush1.xpose.msra.mxu0 0.0
        %1766 = vmatprep.subr.mxu0 0.0
        %1767 = vmatpush1.xpose.msra.mxu0 0.0
        %1768 = vmatprep.subr.mxu0 0.0
        %1769 = vmatpush1.xpose.msra.mxu0 0.0
        %1770 = vmatprep.subr.mxu0 0.0
        %1771 = vmatpush1.xpose.msra.mxu0 0.0
        %1772 = vmatprep.subr.mxu0 0.0
        %1773 = vmatpush1.xpose.msra.mxu0 0.0
        %1774 = vmatprep.subr.mxu0 0.0
        %1775 = vmatpush1.xpose.msra.mxu0 0.0
        %1776 = vmatprep.subr.mxu0 0.0
        %1777 = vmatpush1.xpose.msra.mxu0 0.0
        %1778 = vmatprep.subr.mxu0 0.0
        %1779 = vmatpush1.xpose.msra.mxu0 0.0
        %1780 = vmatprep.subr.mxu0 0.0
        %1781 = vmatpush1.xpose.msra.mxu0 0.0
        %1782 = vmatprep.subr.mxu0 0.0
        %1783 = vmatpush1.xpose.msra.mxu0 0.0
        %1784 = vmatprep.subr.mxu0 0.0
        %1785 = vmatpush1.xpose.msra.mxu0 0.0
        %1786 = vmatprep.subr.mxu0 0.0
        %1787 = vmatpush1.xpose.msra.mxu0 0.0
        %1788 = vmatprep.subr.mxu0 0.0
        %1789 = vmatpush1.xpose.msra.mxu0 0.0
        %1790 = vmatprep.subr.mxu0 0.0
        %1791 = vmatpush1.xpose.msra.mxu0 0.0
        %1792 = vmatprep.subr.mxu0 0.0
        %1793 = vmatpush1.xpose.msra.mxu0 0.0
        %1794 = vmatprep.subr.mxu0 0.0
        %1795 = vmatpush1.xpose.msra.mxu0 0.0
        %1796 = vmatprep.subr.mxu0 0.0
        %1797 = vmatpush1.xpose.msra.mxu0 0.0
        %1798 = vmatprep.subr.mxu0 0.0
        %1799 = vmatpush1.xpose.msra.mxu0 0.0
        %1800 = vmatprep.subr.mxu0 0.0
        %1801 = vmatpush1.xpose.msra.mxu0 0.0
        %1802 = vmatprep.subr.mxu0 0.0
        %1803 = vmatpush1.xpose.msra.mxu0 0.0
        %1804 = vmatprep.subr.mxu0 0.0
        %1805 = vmatpush1.xpose.msra.mxu0 0.0
        %1806 = vmatprep.mubr.f32.mxu0 0.0
        %1807 = vmatmul.mubr.f32.gmra.mrb[0].mxu0 %v1738
        %v1808 = vpop.f32.mrb[0].mxu0
        %v1809 = vadd.f32 0.0, %v1808
        %v1810 = vpop.f32.mrb[0].mxu0
        %1811 = vdwg.mxu0
        %v1812 = vsel %vm658, %v1809, -inf
        %1813 = vmax.xlane.f32.xlu0 %v1812
        %v1814 = vpop.xlane.xlu0 %1813
        %v1815 = vsub.f32 %v1809, %v1814
        %v1816 = vmul.f32 %v1815, 1.442695
        %v1817 = vpow.pop %v1816
        %v1818 = vsel %vm658, %v1817, 0.0
        %1819 = vadd.xlane.f32.xlu0 %v1818
        %v1820 = vpop.xlane.xlu0 %1819
        %1821 = vrot.lane.b32.xlu0 %v580, 100
        %v1822 = vpop.permute.xlu0 %1821
        %v1825 = vsel %vm658, %v1817, 0
        %1827 = vmatprep.subr.mxu0 0.0
        %1828 = vmatpush1.msra.mxu0 %v1822
        %1829 = vmatprep.subr.mxu0 0.0
        %1830 = vmatpush1.msra.mxu0 0.0
        %1831 = vmatprep.subr.mxu0 0.0
        %1832 = vmatpush1.msra.mxu0 0.0
        %1833 = vmatprep.subr.mxu0 0.0
        %1834 = vmatpush1.msra.mxu0 0.0
        %1835 = vmatprep.subr.mxu0 0.0
        %1836 = vmatpush1.msra.mxu0 0.0
        %1837 = vmatprep.subr.mxu0 0.0
        %1838 = vmatpush1.msra.mxu0 0.0
        %1839 = vmatprep.subr.mxu0 0.0
        %1840 = vmatpush1.msra.mxu0 0.0
        %1841 = vmatprep.subr.mxu0 0.0
        %1842 = vmatpush1.msra.mxu0 0.0
        %1843 = vmatprep.subr.mxu0 0.0
        %1844 = vmatpush1.msra.mxu0 0.0
        %1845 = vmatprep.subr.mxu0 0.0
        %1846 = vmatpush1.msra.mxu0 0.0
        %1847 = vmatprep.subr.mxu0 0.0
        %1848 = vmatpush1.msra.mxu0 0.0
        %1849 = vmatprep.subr.mxu0 0.0
        %1850 = vmatpush1.msra.mxu0 0.0
        %1851 = vmatprep.subr.mxu0 0.0
        %1852 = vmatpush1.msra.mxu0 0.0
        %1853 = vmatprep.subr.mxu0 0.0
        %1854 = vmatpush1.msra.mxu0 0.0
        %1855 = vmatprep.subr.mxu0 0.0
        %1856 = vmatpush1.msra.mxu0 0.0
        %1857 = vmatprep.subr.mxu0 0.0
        %1858 = vmatpush1.msra.mxu0 0.0
        %1859 = vmatprep.subr.mxu0 0.0
        %1860 = vmatpush1.msra.mxu0 0.0
        %1861 = vmatprep.subr.mxu0 0.0
        %1862 = vmatpush1.msra.mxu0 0.0
        %1863 = vmatprep.subr.mxu0 0.0
        %1864 = vmatpush1.msra.mxu0 0.0
        %1865 = vmatprep.subr.mxu0 0.0
        %1866 = vmatpush1.msra.mxu0 0.0
        %1867 = vmatprep.subr.mxu0 0.0
        %1868 = vmatpush1.msra.mxu0 0.0
        %1869 = vmatprep.subr.mxu0 0.0
        %1870 = vmatpush1.msra.mxu0 0.0
        %1871 = vmatprep.subr.mxu0 0.0
        %1872 = vmatpush1.msra.mxu0 0.0
        %1873 = vmatprep.subr.mxu0 0.0
        %1874 = vmatpush1.msra.mxu0 0.0
        %1875 = vmatprep.subr.mxu0 0.0
        %1876 = vmatpush1.msra.mxu0 0.0
        %1877 = vmatprep.subr.mxu0 0.0
        %1878 = vmatpush1.msra.mxu0 0.0
        %1879 = vmatprep.subr.mxu0 0.0
        %1880 = vmatpush1.msra.mxu0 0.0
        %1881 = vmatprep.subr.mxu0 0.0
        %1882 = vmatpush1.msra.mxu0 0.0
        %1883 = vmatprep.subr.mxu0 0.0
        %1884 = vmatpush1.msra.mxu0 0.0
        %1885 = vmatprep.subr.mxu0 0.0
        %1886 = vmatpush1.msra.mxu0 0.0
        %1887 = vmatprep.subr.mxu0 0.0
        %1888 = vmatpush1.msra.mxu0 0.0
        %1889 = vmatprep.subr.mxu0 0.0
        %1890 = vmatpush1.msra.mxu0 0.0
        %1891 = vmatprep.mubr.f32.mxu0 0.0
        %1892 = vmatmul.mubr.f32.gmra.mrb[0].mxu0 %v1825
        %v1893 = vpop.f32.mrb[0].mxu0
        %v1894 = vadd.f32 0.0, %v1893
        %v1895 = vpop.f32.mrb[0].mxu0
        %1896 = vdwg.mxu0
        %v1897 = vrcp.pop %v1820
        %v1898 = vmul.f32 %v1894, %v1897
        %1900 = vrot.lane.b32.xlu0 %v908, 4
        %v1901 = vpop.permute.xlu0 %1900
        %1904 = vrot.lane.b32.xlu0 %v1073, 8
        %v1905 = vpop.permute.xlu0 %1904
        %1908 = vrot.lane.b32.xlu0 %v1238, 12
        %v1909 = vpop.permute.xlu0 %1908
        %1912 = vrot.lane.b32.xlu0 %v1403, 16
        %v1913 = vpop.permute.xlu0 %1912
        %1916 = vrot.lane.b32.xlu0 %v1568, 20
        %v1917 = vpop.permute.xlu0 %1916
        %1920 = vrot.lane.b32.xlu0 %v1733, 24
        %v1921 = vpop.permute.xlu0 %1920
        %1924 = vrot.lane.b32.xlu0 %v1898, 28
        %v1925 = vpop.permute.xlu0 %1924
        %v1927 = vsel %vm581, %v742, %v1901
        %v1928 = vsel %vm658, %v1927, %v1905
        %vm1929 = vcmask 97280
        %v1930 = vsel %vm1929, %v1928, %v1909
        %vm1931 = vcmask 130048
        %v1932 = vsel %vm1931, %v1930, %v1913
        %vm1933 = vcmask 162816
        %v1934 = vsel %vm1933, %v1932, %v1917
        %vm1935 = vcmask 195584
        %v1936 = vsel %vm1935, %v1934, %v1921
        %vm1937 = vcmask 228352
        %v1938 = vsel %vm1937, %v1936, %v1925
        %v1939 = vld [vmem:[#allocation12] sm:$0xff]
        %v1940 = vld [vmem:[#allocation12 + $0x8] sm:$0xff]
        %v1941 = vld [vmem:[#allocation12 + $0x10] sm:$0xff]
        %v1942 = vld [vmem:[#allocation12 + $0x18] sm:$0xff]
        %v1943 = vld [vmem:[%s5] sm:$0x1]
        %v1945 = vlaneseq
        %v1946 = vshrl.u32 %v1945, 7
        %v1947 = vsub.s32 0, %v1946
        %v1948 = vrot.slane %v1943, %v1947
        %v1951 = vsel %vm505, %v1938, 0
        %1953 = vmatprep.subr.mxu0 0.0
        %1954 = vmatpush1.msra.mxu0 %v1939
        %1955 = vmatprep.subr.mxu0 0.0
        %1956 = vmatpush1.msra.mxu0 %v1940
        %1957 = vmatprep.subr.mxu0 0.0
        %1958 = vmatpush1.msra.mxu0 %v1941
        %1959 = vmatprep.subr.mxu0 0.0
        %1960 = vmatpush1.msra.mxu0 %v1942
        %1961 = vmatprep.subr.mxu0 0.0
        %1962 = vmatpush1.msra.mxu0 0.0
        %1963 = vmatprep.subr.mxu0 0.0
        %1964 = vmatpush1.msra.mxu0 0.0
        %1965 = vmatprep.subr.mxu0 0.0
        %1966 = vmatpush1.msra.mxu0 0.0
        %1967 = vmatprep.subr.mxu0 0.0
        %1968 = vmatpush1.msra.mxu0 0.0
        %1969 = vmatprep.subr.mxu0 0.0
        %1970 = vmatpush1.msra.mxu0 0.0
        %1971 = vmatprep.subr.mxu0 0.0
        %1972 = vmatpush1.msra.mxu0 0.0
        %1973 = vmatprep.subr.mxu0 0.0
        %1974 = vmatpush1.msra.mxu0 0.0
        %1975 = vmatprep.subr.mxu0 0.0
        %1976 = vmatpush1.msra.mxu0 0.0
        %1977 = vmatprep.subr.mxu0 0.0
        %1978 = vmatpush1.msra.mxu0 0.0
        %1979 = vmatprep.subr.mxu0 0.0
        %1980 = vmatpush1.msra.mxu0 0.0
        %1981 = vmatprep.subr.mxu0 0.0
        %1982 = vmatpush1.msra.mxu0 0.0
        %1983 = vmatprep.subr.mxu0 0.0
        %1984 = vmatpush1.msra.mxu0 0.0
        %1985 = vmatprep.subr.mxu0 0.0
        %1986 = vmatpush1.msra.mxu0 0.0
        %1987 = vmatprep.subr.mxu0 0.0
        %1988 = vmatpush1.msra.mxu0 0.0
        %1989 = vmatprep.subr.mxu0 0.0
        %1990 = vmatpush1.msra.mxu0 0.0
        %1991 = vmatprep.subr.mxu0 0.0
        %1992 = vmatpush1.msra.mxu0 0.0
        %1993 = vmatprep.subr.mxu0 0.0
        %1994 = vmatpush1.msra.mxu0 0.0
        %1995 = vmatprep.subr.mxu0 0.0
        %1996 = vmatpush1.msra.mxu0 0.0
        %1997 = vmatprep.subr.mxu0 0.0
        %1998 = vmatpush1.msra.mxu0 0.0
        %1999 = vmatprep.subr.mxu0 0.0
        %2000 = vmatpush1.msra.mxu0 0.0
        %2001 = vmatprep.subr.mxu0 0.0
        %2002 = vmatpush1.msra.mxu0 0.0
        %2003 = vmatprep.subr.mxu0 0.0
        %2004 = vmatpush1.msra.mxu0 0.0
        %2005 = vmatprep.subr.mxu0 0.0
        %2006 = vmatpush1.msra.mxu0 0.0
        %2007 = vmatprep.subr.mxu0 0.0
        %2008 = vmatpush1.msra.mxu0 0.0
        %2009 = vmatprep.subr.mxu0 0.0
        %2010 = vmatpush1.msra.mxu0 0.0
        %2011 = vmatprep.subr.mxu0 0.0
        %2012 = vmatpush1.msra.mxu0 0.0
        %2013 = vmatprep.subr.mxu0 0.0
        %2014 = vmatpush1.msra.mxu0 0.0
        %2015 = vmatprep.subr.mxu0 0.0
        %2016 = vmatpush1.msra.mxu0 0.0
        %2017 = vmatprep.mubr.f32.mxu0 0.0
        %2018 = vmatmul.mubr.f32.gmra.mrb[0].mxu0 %v1951
        %v2019 = vpop.f32.mrb[0].mxu0
        %v2020 = vadd.f32 %v1948, %v2019
        %v2021 = vpop.f32.mrb[0].mxu0
        %2022 = vdwg.mxu0
        %2023 = vst.msk [vmem:[%s338] sm:$0xff] %vm505, %v2020
        %s2024 = sand.u32 %s178, 1
        %s2025 = scalar_lea.sflag [#allocation6], %s2024
        %s2026 = sand.u32 %s178, 1
        %s2027 = smul.addr %s2026, 8
        %s2028 = scalar_lea.vmem [#allocation13], %s2027
        // Predicated region
        $region69: #{tpu_custom_call.1} parent=43 // pred_check
          %p2029 = pneg %p188
        $region70: #{tpu_custom_call.1} parent=43 // pred_check_branch
          %2031 = sbr.rel (%p2029) target = $region72
        $region71: #{tpu_custom_call.1} parent=43 // pred_region
          %s2033 = ssub.s32 128, 128
          %2034 = vsyncadd %s2025, %s2033
          %s2035 = sadd.s32 %s30, %s29
          %s2036 = smul.addr %s2035, 128
          %s2037 = scalar_lea.hbm %s6, %s2036
          %s2039 = sshll.u32 %s2028, 4
          %s2040 = int_to_ptr.vmem [resolvable:$true] %s2039
          %2042 = dma.vmem_to_hbm [thread:$0]  %s2040, 128, %s2037, %s2025
        $region72: #{tpu_custom_call.1} parent=43 // pred_fallthru
          _
      $region44: #{tpu_custom_call.1} parent=5 // pred_fallthru
        _
      %p2043 = scmp.le.s32.totalorder 2, %s20
      // Predicated region
      $region73: #{tpu_custom_call.1} parent=5 // pred_check
        %p2044 = pneg %p2043
      $region74: #{tpu_custom_call.1} parent=5 // pred_check_branch
        %2046 = sbr.rel (%p2044) target = $region76
      $region75: #{tpu_custom_call.1} parent=5 // pred_region
        %s2047 = ssub.s32 %s20, 2
        // Predicated region
        $region77: #{tpu_custom_call.1} parent=75 // pred_check
          %p2048 = pneg %p194
        $region78: #{tpu_custom_call.1} parent=75 // pred_check_branch
          %2050 = sbr.rel (%p2048) target = $region80
        $region79: #{tpu_custom_call.1} parent=75 // pred_region
          %s2051 = sand.u32 %s179, 1
          %s2052 = scalar_lea.sflag [#allocation6], %s2051
          %s2053 = sand.u32 %s179, 1
          %s2054 = smul.addr %s2053, 8
          %s2055 = scalar_lea.vmem [#allocation13], %s2054
          %2056 = dma.done %s2052, 128
        $region80: #{tpu_custom_call.1} parent=75 // pred_fallthru
          _
      $region76: #{tpu_custom_call.1} parent=5 // pred_fallthru
        _
    $region6: #{tpu_custom_call.1} parent=1 // loop_footer
      %s24 = sadd.s32 1, %s20
    $region7: #{tpu_custom_call.1} parent=1 // loop_footer_branch
      %19 = sbr.rel target = $region3
    $region8: #{tpu_custom_call.1} parent=1 // loop_exit
      _
    %2057 = vsyncpa [#allocation5], 1
    %s2058 = scalar_lea.sflag [#allocation5], 1
    %2059 = vsyncpa %s2058, 1
    %2060 = vsyncpa [#allocation8], 1
    %2061 = vsyncpa [#allocation11], 1
    %2062 = vsyncpa [#allocation6], 1
    %s2063 = scalar_lea.sflag [#allocation6], 1
    %2064 = vsyncpa %s2063, 1

</llo_original>
